<compile_context>
chip_gen: v6e
topology: v6e:2x2x1
jax: 0.10.0
libtpu: 0.0.40
codegen_flags: <defaults>
</compile_context>

<pallas_src>
import jax
import jax.numpy as jnp
from jax.experimental import pallas as pl
from jax.experimental.pallas import tpu as pltpu

LN_EPS = 1e-5  # torch.nn.LayerNorm default


def _layernorm_nopaffine(h):
    """One-pass LayerNorm (no affine; affine is folded into the output GEMM)."""
    d = h.shape[-1]
    inv_d = 1.0 / d
    s1 = jnp.sum(h, axis=-1, keepdims=True)
    s2 = jnp.sum(h * h, axis=-1, keepdims=True)
    mean = s1 * inv_d
    var = s2 * inv_d - mean * mean
    return (h - mean) * jax.lax.rsqrt(var + LN_EPS)


def combiner_kernel(x1_ref, x2_ref,
                    w1_ref, b1_ref,
                    w2_ref, b2_ref,
                    woa_ref, wob_ref, bo_ref,
                    o_ref):
    # Cast activations to bf16 inside the kernel (never materialized in HBM).
    x1 = x1_ref[...].astype(jnp.bfloat16)
    x2 = x2_ref[...].astype(jnp.bfloat16)

    # ff1: Linear(4096 -> D) + LayerNorm (affine folded into Wo).
    h1 = jnp.dot(x1, w1_ref[...], preferred_element_type=jnp.float32) + b1_ref[...]
    h1 = _layernorm_nopaffine(h1)

    # ff2: Linear(D -> D) + LayerNorm (affine folded into Wo).
    h2 = jnp.dot(x2, w2_ref[...], preferred_element_type=jnp.float32) + b2_ref[...]
    h2 = _layernorm_nopaffine(h2)

    # out: Linear(2D -> D) on concat(h1, h2)
    #      == h1 @ (g1*Wo[:D]) + h2 @ (g2*Wo[D:]) + (bo + be1@Wo[:D] + be2@Wo[D:])
    out = (jnp.dot(h1.astype(jnp.bfloat16), woa_ref[...],
                   preferred_element_type=jnp.float32)
           + jnp.dot(h2.astype(jnp.bfloat16), wob_ref[...],
                     preferred_element_type=jnp.float32)
           + bo_ref[...])

    o_ref[...] = out.astype(o_ref.dtype)


def combiner_forward(x1, x2, kparams, *, tm=512, out_dtype=jnp.float32):
    """x1: (N, 4096), x2: (N, D) -> (N, D).

    kparams = (w1, b1, w2, b2, woa_folded, wob_folded, bo_folded) from
    prepare_kernel_params().  x1/x2 may be f32 (cast to bf16 in-kernel) or bf16.
    """
    N, d_in = x1.shape
    d = x2.shape[-1]
    assert tm % 8 == 0, "token tile must respect the (8,128) sublane constraint"
    assert d % 128 == 0 and d_in % 128 == 0, "feature dims must be lane-dense (x128)"

    (w1, b1, w2, b2, woa, wob, bo) = kparams

    # Clamp the token tile for small inputs; no host-side padding of x1/x2 —
    # the ragged last block is handled by Pallas edge-block masking.
    tm = max(8, min(tm, -(-N // 8) * 8))
    n_blocks = pl.cdiv(N, tm)

    x_bytes = x1.dtype.itemsize   # 4 for f32 inputs, 2 if producer hands us bf16
    o_bytes = jnp.dtype(out_dtype).itemsize

    # Constant parameters: whole-array, VMEM-resident, never re-pipelined.
    resident = pl.BlockSpec(memory_space=pltpu.MemorySpace.VMEM)

    # VMEM budget: resident weights (x2 insurance in case Mosaic double-buffers
    # them) + double-buffered activation tiles + in-kernel scratch headroom.
    weight_vmem = (d_in * d + 3 * d * d) * 2 + 3 * d * 4
    act_vmem = 2 * tm * d_in * x_bytes + 2 * tm * d * x_bytes + 2 * tm * d * o_bytes
    scratch = tm * d_in * 2 + tm * d * 2 + 4 * tm * d * 4 + (6 << 20)
    needed = 2 * weight_vmem + act_vmem + scratch
    try:
        cap = int(0.75 * pltpu.get_tpu_info().vmem_capacity_bytes)
    except Exception:  # pragma: no cover - conservative fallback
        cap = 48 << 20
    vmem_limit = int(min(max(needed, 32 << 20), cap))

    # Advisory cost estimate for the XLA scheduler.
    flops = 2 * N * (d_in * d + d * d + 2 * d * d)
    bytes_accessed = (N * d_in * x_bytes + N * d * x_bytes + N * d * o_bytes
                      + weight_vmem)
    cost = pl.CostEstimate(flops=flops, transcendentals=2 * N,
                           bytes_accessed=bytes_accessed)

    grid_spec = pltpu.PrefetchScalarGridSpec(
        num_scalar_prefetch=0,
        grid=(n_blocks,),
        in_specs=[
            pl.BlockSpec((tm, d_in), lambda i: (i, 0)),   # x1 tile (f32 in HBM)
            pl.BlockSpec((tm, d), lambda i: (i, 0)),      # x2 tile
            resident, resident,                           # ff1: w1, b1
            resident, resident,                           # ff2: w2, b2
            resident, resident, resident,                 # out: Wo_a', Wo_b', bo'
        ],
        out_specs=pl.BlockSpec((tm, d), lambda i: (i, 0)),
    )

    return pl.pallas_call(
        combiner_kernel,
        out_shape=jax.ShapeDtypeStruct((N, d), out_dtype),
        grid_spec=grid_spec,
        compiler_params=pltpu.CompilerParams(
            dimension_semantics=("parallel",),
            vmem_limit_bytes=vmem_limit),
        cost_estimate=cost,
    )(x1, x2, w1, b1, w2, b2, woa, wob, bo)


def init_params(key, d_model, d_in=4096):
    """Deterministic synthetic parameters in f32, matching the torch module.

    Matmul weights are stored as (in, out) == torch weight.T.
    """
    ks = jax.random.split(key, 12)
    s1 = 1.0 / jnp.sqrt(d_in)
    s2 = 1.0 / jnp.sqrt(d_model)
    s3 = 1.0 / jnp.sqrt(2 * d_model)
    u = lambda k, shape, s: jax.random.uniform(k, shape, jnp.float32, -s, s)
    return dict(
        w1=u(ks[0], (d_in, d_model), s1),
        b1=u(ks[1], (d_model,), s1),
        g1=1.0 + 0.1 * jax.random.uniform(ks[2], (d_model,), jnp.float32, -1.0, 1.0),
        be1=0.1 * jax.random.uniform(ks[3], (d_model,), jnp.float32, -1.0, 1.0),
        w2=u(ks[4], (d_model, d_model), s2),
        b2=u(ks[5], (d_model,), s2),
        g2=1.0 + 0.1 * jax.random.uniform(ks[6], (d_model,), jnp.float32, -1.0, 1.0),
        be2=0.1 * jax.random.uniform(ks[7], (d_model,), jnp.float32, -1.0, 1.0),
        wo=u(ks[8], (2 * d_model, d_model), s3),
        bo=u(ks[9], (d_model,), s3),
    )


def prepare_kernel_params(p):
    """Fold LN affine into the output GEMM and cast MXU weights to bf16.

    h1_affine @ Wo_a = ((h1_norm * g1 + be1)) @ Wo_a
                     = h1_norm @ (g1[:, None] * Wo_a) + be1 @ Wo_a
    so:  Wo_a' = g1[:, None] * Wo_a ;  Wo_b' = g2[:, None] * Wo_b
         bo'   = bo + be1 @ Wo_a + be2 @ Wo_b
    """
    d = p["g1"].shape[-1]
    woa = p["wo"][:d].astype(jnp.float32)
    wob = p["wo"][d:].astype(jnp.float32)
    g1 = p["g1"].reshape(d, 1).astype(jnp.float32)
    g2 = p["g2"].reshape(d, 1).astype(jnp.float32)
    be1 = p["be1"].reshape(1, d).astype(jnp.float32)
    be2 = p["be2"].reshape(1, d).astype(jnp.float32)

    woa_f = g1 * woa
    wob_f = g2 * wob
    bo_f = p["bo"].reshape(1, d).astype(jnp.float32) + be1 @ woa + be2 @ wob

    bf = lambda a: a.astype(jnp.bfloat16)
    return (bf(p["w1"]), p["b1"].reshape(1, -1).astype(jnp.float32),
            bf(p["w2"]), p["b2"].reshape(1, -1).astype(jnp.float32),
            bf(woa_f), bf(wob_f), bo_f)


def combiner_ref(x1, x2, p):
    """Pure f32 reference with the original module semantics (no folding)."""
    def ln(h, g, b):
        m = jnp.mean(h, axis=-1, keepdims=True)
        v = jnp.mean(jnp.square(h - m), axis=-1, keepdims=True)
        return (h - m) * jax.lax.rsqrt(v + LN_EPS) * g + b

    h1 = ln(x1 @ p["w1"] + p["b1"], p["g1"], p["be1"])
    h2 = ln(x2 @ p["w2"] + p["b2"], p["g2"], p["be2"])
    return jnp.concatenate([h1, h2], axis=-1) @ p["wo"] + p["bo"]


if __name__ == "__main__":
    key = jax.random.PRNGKey(0)
    k_p, k_x1, k_x2 = jax.random.split(key, 3)

    # d_model=128 keeps every feature dim lane-dense (multiple of 128).
    batch, seq, d_model, d_in = 2, 8, 128, 4096
    N = batch * seq

    params = init_params(k_p, d_model, d_in)
    kparams = prepare_kernel_params(params)

    x1 = jax.random.normal(k_x1, (batch, seq, d_in), jnp.float32)
    x2 = jax.random.normal(k_x2, (batch, seq, d_model), jnp.float32)

    # Flatten (batch, seq) -> tokens for the kernel; restore afterwards.
    out = combiner_forward(x1.reshape(N, d_in), x2.reshape(N, d_model), kparams)
    out = out.reshape(batch, seq, d_model)
    jax.block_until_ready(out)

    ref = combiner_ref(x1, x2, params)
    # bf16 MXU operands with f32 accumulation -> O(1e-2) deviation from the
    # f32 PyTorch module is expected and intended.
    assert jnp.allclose(out, ref, atol=2e-2, rtol=2e-2), "mismatch vs reference"

    print("KERNEL_OK")
</pallas_src>

<mosaic_0001>
module attributes {stable_mosaic.version = 11 : i64} {
  func.func @combiner_kernel(%arg0: i32, %arg1: memref<16x4096xf32, #tpu.memory_space<vmem>>, %arg2: memref<16x128xf32, #tpu.memory_space<vmem>>, %arg3: memref<4096x128xbf16, #tpu.memory_space<vmem>>, %arg4: memref<1x128xf32, #tpu.memory_space<vmem>>, %arg5: memref<128x128xbf16, #tpu.memory_space<vmem>>, %arg6: memref<1x128xf32, #tpu.memory_space<vmem>>, %arg7: memref<128x128xbf16, #tpu.memory_space<vmem>>, %arg8: memref<128x128xbf16, #tpu.memory_space<vmem>>, %arg9: memref<1x128xf32, #tpu.memory_space<vmem>>, %arg10: memref<16x128xf32, #tpu.memory_space<vmem>>) attributes {dimension_semantics = [#tpu.dimension_semantics<parallel>], iteration_bounds = array<i64: 1>, scalar_prefetch = 0 : i64, scratch_operands = 0 : i64, tpu.core_type = #tpu.core_type<tc>, window_params = [{transform_indices = @transform_0, window_bounds = array<i64: 16, 4096>}, {transform_indices = @transform_1, window_bounds = array<i64: 16, 128>}, {pipeline_mode = #tpu.pipeline_mode<synchronous>, transform_indices = @transform_2, window_bounds = array<i64: 4096, 128>}, {pipeline_mode = #tpu.pipeline_mode<synchronous>, transform_indices = @transform_3, window_bounds = array<i64: 1, 128>}, {pipeline_mode = #tpu.pipeline_mode<synchronous>, transform_indices = @transform_4, window_bounds = array<i64: 128, 128>}, {pipeline_mode = #tpu.pipeline_mode<synchronous>, transform_indices = @transform_5, window_bounds = array<i64: 1, 128>}, {pipeline_mode = #tpu.pipeline_mode<synchronous>, transform_indices = @transform_6, window_bounds = array<i64: 128, 128>}, {pipeline_mode = #tpu.pipeline_mode<synchronous>, transform_indices = @transform_7, window_bounds = array<i64: 128, 128>}, {pipeline_mode = #tpu.pipeline_mode<synchronous>, transform_indices = @transform_8, window_bounds = array<i64: 1, 128>}, {transform_indices = @transform_9, window_bounds = array<i64: 16, 128>}]} {
    %c0 = arith.constant 0 : index
    %c0_0 = arith.constant 0 : index
    %0 = vector.load %arg1[%c0, %c0_0] : memref<16x4096xf32, #tpu.memory_space<vmem>>, vector<16x4096xf32>
    %1 = arith.truncf %0 : vector<16x4096xf32> to vector<16x4096xbf16>
    %c0_1 = arith.constant 0 : index
    %c0_2 = arith.constant 0 : index
    %2 = vector.load %arg2[%c0_1, %c0_2] : memref<16x128xf32, #tpu.memory_space<vmem>>, vector<16x128xf32>
    %3 = arith.truncf %2 : vector<16x128xf32> to vector<16x128xbf16>
    %c0_3 = arith.constant 0 : index
    %c0_4 = arith.constant 0 : index
    %4 = vector.load %arg3[%c0_3, %c0_4] : memref<4096x128xbf16, #tpu.memory_space<vmem>>, vector<4096x128xbf16>
    %cst = arith.constant dense<0.000000e+00> : vector<16x128xf32>
    %5 = tpu.matmul %1, %4, %cst {dimension_numbers = #tpu.dot_dimension_numbers<[1], [0], [0], [1], [0, 0, 1, 1], [], []>} : vector<16x4096xbf16>, vector<4096x128xbf16>, vector<16x128xf32> -> vector<16x128xf32>
    %c0_5 = arith.constant 0 : index
    %c0_6 = arith.constant 0 : index
    %6 = vector.load %arg4[%c0_5, %c0_6] : memref<1x128xf32, #tpu.memory_space<vmem>>, vector<1x128xf32>
    %7 = vector.broadcast %6 : vector<1x128xf32> to vector<16x128xf32>
    %8 = arith.addf %5, %7 : vector<16x128xf32>
    %cst_7 = arith.constant dense<0.000000e+00> : vector<16xf32>
    %9 = vector.multi_reduction <add>, %8, %cst_7 [1] : vector<16x128xf32> to vector<16xf32>
    %10 = vector.shape_cast %9 : vector<16xf32> to vector<16x1xf32>
    %11 = arith.mulf %8, %8 : vector<16x128xf32>
    %cst_8 = arith.constant dense<0.000000e+00> : vector<16xf32>
    %12 = vector.multi_reduction <add>, %11, %cst_8 [1] : vector<16x128xf32> to vector<16xf32>
    %13 = vector.shape_cast %12 : vector<16xf32> to vector<16x1xf32>
    %cst_9 = arith.constant 7.812500e-03 : f32
    %14 = vector.broadcast %cst_9 : f32 to vector<16x1xf32>
    %15 = arith.mulf %10, %14 : vector<16x1xf32>
    %cst_10 = arith.constant 7.812500e-03 : f32
    %16 = vector.broadcast %cst_10 : f32 to vector<16x1xf32>
    %17 = arith.mulf %13, %16 : vector<16x1xf32>
    %18 = arith.mulf %15, %15 : vector<16x1xf32>
    %19 = arith.subf %17, %18 : vector<16x1xf32>
    %20 = vector.broadcast %15 : vector<16x1xf32> to vector<16x128xf32>
    %21 = arith.subf %8, %20 : vector<16x128xf32>
    %cst_11 = arith.constant 9.99999974E-6 : f32
    %22 = vector.broadcast %cst_11 : f32 to vector<16x1xf32>
    %23 = arith.addf %19, %22 : vector<16x1xf32>
    %24 = math.rsqrt %23 : vector<16x1xf32>
    %25 = vector.broadcast %24 : vector<16x1xf32> to vector<16x128xf32>
    %26 = arith.mulf %21, %25 : vector<16x128xf32>
    %c0_12 = arith.constant 0 : index
    %c0_13 = arith.constant 0 : index
    %27 = vector.load %arg5[%c0_12, %c0_13] : memref<128x128xbf16, #tpu.memory_space<vmem>>, vector<128x128xbf16>
    %cst_14 = arith.constant dense<0.000000e+00> : vector<16x128xf32>
    %28 = tpu.matmul %3, %27, %cst_14 {dimension_numbers = #tpu.dot_dimension_numbers<[1], [0], [0], [1], [0, 0, 1, 1], [], []>} : vector<16x128xbf16>, vector<128x128xbf16>, vector<16x128xf32> -> vector<16x128xf32>
    %c0_15 = arith.constant 0 : index
    %c0_16 = arith.constant 0 : index
    %29 = vector.load %arg6[%c0_15, %c0_16] : memref<1x128xf32, #tpu.memory_space<vmem>>, vector<1x128xf32>
    %30 = vector.broadcast %29 : vector<1x128xf32> to vector<16x128xf32>
    %31 = arith.addf %28, %30 : vector<16x128xf32>
    %cst_17 = arith.constant dense<0.000000e+00> : vector<16xf32>
    %32 = vector.multi_reduction <add>, %31, %cst_17 [1] : vector<16x128xf32> to vector<16xf32>
    %33 = vector.shape_cast %32 : vector<16xf32> to vector<16x1xf32>
    %34 = arith.mulf %31, %31 : vector<16x128xf32>
    %cst_18 = arith.constant dense<0.000000e+00> : vector<16xf32>
    %35 = vector.multi_reduction <add>, %34, %cst_18 [1] : vector<16x128xf32> to vector<16xf32>
    %36 = vector.shape_cast %35 : vector<16xf32> to vector<16x1xf32>
    %cst_19 = arith.constant 7.812500e-03 : f32
    %37 = vector.broadcast %cst_19 : f32 to vector<16x1xf32>
    %38 = arith.mulf %33, %37 : vector<16x1xf32>
    %cst_20 = arith.constant 7.812500e-03 : f32
    %39 = vector.broadcast %cst_20 : f32 to vector<16x1xf32>
    %40 = arith.mulf %36, %39 : vector<16x1xf32>
    %41 = arith.mulf %38, %38 : vector<16x1xf32>
    %42 = arith.subf %40, %41 : vector<16x1xf32>
    %43 = vector.broadcast %38 : vector<16x1xf32> to vector<16x128xf32>
    %44 = arith.subf %31, %43 : vector<16x128xf32>
    %cst_21 = arith.constant 9.99999974E-6 : f32
    %45 = vector.broadcast %cst_21 : f32 to vector<16x1xf32>
    %46 = arith.addf %42, %45 : vector<16x1xf32>
    %47 = math.rsqrt %46 : vector<16x1xf32>
    %48 = vector.broadcast %47 : vector<16x1xf32> to vector<16x128xf32>
    %49 = arith.mulf %44, %48 : vector<16x128xf32>
    %50 = arith.truncf %26 : vector<16x128xf32> to vector<16x128xbf16>
    %c0_22 = arith.constant 0 : index
    %c0_23 = arith.constant 0 : index
    %51 = vector.load %arg7[%c0_22, %c0_23] : memref<128x128xbf16, #tpu.memory_space<vmem>>, vector<128x128xbf16>
    %cst_24 = arith.constant dense<0.000000e+00> : vector<16x128xf32>
    %52 = tpu.matmul %50, %51, %cst_24 {dimension_numbers = #tpu.dot_dimension_numbers<[1], [0], [0], [1], [0, 0, 1, 1], [], []>} : vector<16x128xbf16>, vector<128x128xbf16>, vector<16x128xf32> -> vector<16x128xf32>
    %53 = arith.truncf %49 : vector<16x128xf32> to vector<16x128xbf16>
    %c0_25 = arith.constant 0 : index
    %c0_26 = arith.constant 0 : index
    %54 = vector.load %arg8[%c0_25, %c0_26] : memref<128x128xbf16, #tpu.memory_space<vmem>>, vector<128x128xbf16>
    %cst_27 = arith.constant dense<0.000000e+00> : vector<16x128xf32>
    %55 = tpu.matmul %53, %54, %cst_27 {dimension_numbers = #tpu.dot_dimension_numbers<[1], [0], [0], [1], [0, 0, 1, 1], [], []>} : vector<16x128xbf16>, vector<128x128xbf16>, vector<16x128xf32> -> vector<16x128xf32>
    %56 = arith.addf %52, %55 : vector<16x128xf32>
    %c0_28 = arith.constant 0 : index
    %c0_29 = arith.constant 0 : index
    %57 = vector.load %arg9[%c0_28, %c0_29] : memref<1x128xf32, #tpu.memory_space<vmem>>, vector<1x128xf32>
    %58 = vector.broadcast %57 : vector<1x128xf32> to vector<16x128xf32>
    %59 = arith.addf %56, %58 : vector<16x128xf32>
    %c0_30 = arith.constant 0 : index
    %c0_31 = arith.constant 0 : index
    %60 = vector.load %arg10[%c0_30, %c0_31] : memref<16x128xf32, #tpu.memory_space<vmem>>, vector<16x128xf32>
    tpu.vector_store %arg10[%c0_30, %c0_31], %59 {strides = array<i32>} : memref<16x128xf32, #tpu.memory_space<vmem>>, vector<16x128xf32>,
    return
  }
  func.func @transform_0(%arg0: i32) -> (i32, i32) {
    %c0_i32 = arith.constant 0 : i32
    %c0_i32_0 = arith.constant 0 : i32
    return %arg0, %c0_i32 : i32, i32
  }
  func.func @transform_1(%arg0: i32) -> (i32, i32) {
    %c0_i32 = arith.constant 0 : i32
    %c0_i32_0 = arith.constant 0 : i32
    return %arg0, %c0_i32 : i32, i32
  }
  func.func @transform_2(%arg0: i32) -> (i32, i32) {
    %c0_i32 = arith.constant 0 : i32
    %c0_i32_0 = arith.constant 0 : i32
    %c0_i32_1 = arith.constant 0 : i32
    return %c0_i32, %c0_i32_0 : i32, i32
  }
  func.func @transform_3(%arg0: i32) -> (i32, i32) {
    %c0_i32 = arith.constant 0 : i32
    %c0_i32_0 = arith.constant 0 : i32
    %c0_i32_1 = arith.constant 0 : i32
    return %c0_i32, %c0_i32_0 : i32, i32
  }
  func.func @transform_4(%arg0: i32) -> (i32, i32) {
    %c0_i32 = arith.constant 0 : i32
    %c0_i32_0 = arith.constant 0 : i32
    %c0_i32_1 = arith.constant 0 : i32
    return %c0_i32, %c0_i32_0 : i32, i32
  }
  func.func @transform_5(%arg0: i32) -> (i32, i32) {
    %c0_i32 = arith.constant 0 : i32
    %c0_i32_0 = arith.constant 0 : i32
    %c0_i32_1 = arith.constant 0 : i32
    return %c0_i32, %c0_i32_0 : i32, i32
  }
  func.func @transform_6(%arg0: i32) -> (i32, i32) {
    %c0_i32 = arith.constant 0 : i32
    %c0_i32_0 = arith.constant 0 : i32
    %c0_i32_1 = arith.constant 0 : i32
    return %c0_i32, %c0_i32_0 : i32, i32
  }
  func.func @transform_7(%arg0: i32) -> (i32, i32) {
    %c0_i32 = arith.constant 0 : i32
    %c0_i32_0 = arith.constant 0 : i32
    %c0_i32_1 = arith.constant 0 : i32
    return %c0_i32, %c0_i32_0 : i32, i32
  }
  func.func @transform_8(%arg0: i32) -> (i32, i32) {
    %c0_i32 = arith.constant 0 : i32
    %c0_i32_0 = arith.constant 0 : i32
    %c0_i32_1 = arith.constant 0 : i32
    return %c0_i32, %c0_i32_0 : i32, i32
  }
  func.func @transform_9(%arg0: i32) -> (i32, i32) {
    %c0_i32 = arith.constant 0 : i32
    %c0_i32_0 = arith.constant 0 : i32
    return %arg0, %c0_i32 : i32, i32
  }
}

</mosaic_0001>

<llo_original>
// kernel: tpu_custom_call.1
$region0: #{tpu_custom_call.1}
  #allocation0 [shape = 'u32[]', space=smem, size = 0x4, offset = 0x4, fixed_abs, tag = 'smem constant byte address 0x4 - core index']
  #allocation1 [shape = 'u32[144,128]{1,0:T(1,128)}', space=vmem, size = 0x12000, scoped, tag = 'internal scratch']
  %s0 = inlined_call_operand.hbm [shape: f32[16,4096], index: 0, kind: input, shape index: {}]
  %s1 = inlined_call_operand.hbm [shape: f32[16,128], index: 1, kind: input, shape index: {}]
  %s2 = inlined_call_operand.hbm [shape: bf16[4096,128], index: 2, kind: input, shape index: {}]
  %s3 = inlined_call_operand.vmem [shape: f32[1,128], index: 3, kind: input, shape index: {}]
  %s4 = inlined_call_operand.hbm [shape: bf16[128,128], index: 4, kind: input, shape index: {}]
  %s5 = inlined_call_operand.vmem [shape: f32[1,128], index: 5, kind: input, shape index: {}]
  %s6 = inlined_call_operand.hbm [shape: bf16[128,128], index: 6, kind: input, shape index: {}]
  %s7 = inlined_call_operand.hbm [shape: bf16[128,128], index: 7, kind: input, shape index: {}]
  %s8 = inlined_call_operand.vmem [shape: f32[1,128], index: 8, kind: input, shape index: {}]
  %s9 = inlined_call_operand.hbm [shape: f32[16,128], index: 9, kind: output, shape index: {}]
  %s10 = sld [smem:[#allocation0]]
  $region70: #{tpu_custom_call.1} parent=0
    _
  %s12 = ssub.s32 1, %s10
  %s13 = scalar_select 0, %s12, %s10
  $region1: #{tpu_custom_call.1} parent=0
    #allocation2 [shape = 'u8[262144]{0}', space=vmem, size = 0x40000, scoped, tag = 'input window, operand 0, single buffered']
    #allocation3 [shape = 's32[1]{0}', space=sflag, size = 0x4, scoped, tag = 'scoped memory for tpu_custom_call.1']
    #allocation4 [shape = 's32[1]{0}', space=sflag, size = 0x4, scoped, tag = 'scoped memory for tpu_custom_call.1']
    #allocation5 [shape = 'u8[8192]{0}', space=vmem, size = 0x2000, scoped, tag = 'input window, operand 1, single buffered']
    #allocation6 [shape = 's32[1]{0}', space=sflag, size = 0x4, scoped, tag = 'scoped memory for tpu_custom_call.1']
    #allocation7 [shape = 'u8[1048576]{0}', space=vmem, size = 0x100000, scoped, tag = 'input window, operand 2, single buffered']
    #allocation8 [shape = 'u8[32768]{0}', space=vmem, size = 0x8000, scoped, tag = 'input window, operand 4, single buffered']
    #allocation9 [shape = 's32[1]{0}', space=sflag, size = 0x4, scoped, tag = 'scoped memory for tpu_custom_call.1']
    #allocation10 [shape = 'u8[32768]{0}', space=vmem, size = 0x8000, scoped, tag = 'input window, operand 6, single buffered']
    #allocation11 [shape = 'u8[32768]{0}', space=vmem, size = 0x8000, scoped, tag = 'input window, operand 7, single buffered']
    #allocation12 [shape = 's32[1]{0}', space=sflag, size = 0x4, scoped, tag = 'scoped memory for tpu_custom_call.1']
    #allocation13 [shape = 'u8[8192]{0}', space=vmem, size = 0x2000, scoped, tag = 'output window, operand 0, single buffered']
    %14 = vsyncpa [#allocation3], 0
    %15 = vsyncpa [#allocation6], 0
    %16 = vsyncpa [#allocation9], 0
    %17 = vsyncpa [#allocation12], 0
    %18 = vsyncpa [#allocation4], 0
    // Predicated region
    $region2: #{tpu_custom_call.1} parent=1 // pred_check
      _
    $region3: #{tpu_custom_call.1} parent=1 // pred_check_branch
      %20 = sbr.rel (0) target = $region5
    $region4: #{tpu_custom_call.1} parent=1 // pred_region
      %s22 = ssub.s32 8192, 8192
      %23 = vsyncadd [#allocation3], %s22
      %s24 = sshll.u32 [#allocation2], 4
      %s25 = int_to_ptr.vmem [resolvable:$true] %s24
      %30 = dma.hbm_to_vmem [thread:$0]  %s0, 8192, %s25, [#allocation3], 4096, 4096, 256
    $region5: #{tpu_custom_call.1} parent=1 // pred_fallthru
      _
    // Predicated region
    $region6: #{tpu_custom_call.1} parent=1 // pred_check
      _
    $region7: #{tpu_custom_call.1} parent=1 // pred_check_branch
      %32 = sbr.rel (0) target = $region9
    $region8: #{tpu_custom_call.1} parent=1 // pred_region
      %s34 = ssub.s32 256, 256
      %35 = vsyncadd [#allocation6], %s34
      %s36 = sshll.u32 [#allocation5], 4
      %s37 = int_to_ptr.vmem [resolvable:$true] %s36
      %42 = dma.hbm_to_vmem [thread:$0]  %s1, 256, %s37, [#allocation6], 128, 128, 8
    $region9: #{tpu_custom_call.1} parent=1 // pred_fallthru
      _
    // Predicated region
    $region10: #{tpu_custom_call.1} parent=1 // pred_check
      _
    $region11: #{tpu_custom_call.1} parent=1 // pred_check_branch
      %44 = sbr.rel (0) target = $region13
    $region12: #{tpu_custom_call.1} parent=1 // pred_region
      %s46 = ssub.s32 32768, 32768
      %47 = vsyncadd [#allocation6], %s46
      %s48 = sshll.u32 [#allocation7], 4
      %s49 = int_to_ptr.vmem [resolvable:$true] %s48
      %54 = dma.hbm_to_vmem [thread:$0]  %s2, 32768, %s49, [#allocation6], 64, 64, 4
    $region13: #{tpu_custom_call.1} parent=1 // pred_fallthru
      _
    // Predicated region
    $region14: #{tpu_custom_call.1} parent=1 // pred_check
      _
    $region15: #{tpu_custom_call.1} parent=1 // pred_check_branch
      %56 = sbr.rel (0) target = $region17
    $region16: #{tpu_custom_call.1} parent=1 // pred_region
      _
    $region17: #{tpu_custom_call.1} parent=1 // pred_fallthru
      _
    // Predicated region
    $region18: #{tpu_custom_call.1} parent=1 // pred_check
      _
    $region19: #{tpu_custom_call.1} parent=1 // pred_check_branch
      %58 = sbr.rel (0) target = $region21
    $region20: #{tpu_custom_call.1} parent=1 // pred_region
      %s60 = ssub.s32 1024, 1024
      %61 = vsyncadd [#allocation9], %s60
      %s62 = sshll.u32 [#allocation8], 4
      %s63 = int_to_ptr.vmem [resolvable:$true] %s62
      %68 = dma.hbm_to_vmem [thread:$0]  %s4, 1024, %s63, [#allocation9], 64, 64, 4
    $region21: #{tpu_custom_call.1} parent=1 // pred_fallthru
      _
    // Predicated region
    $region22: #{tpu_custom_call.1} parent=1 // pred_check
      _
    $region23: #{tpu_custom_call.1} parent=1 // pred_check_branch
      %70 = sbr.rel (0) target = $region25
    $region24: #{tpu_custom_call.1} parent=1 // pred_region
      _
    $region25: #{tpu_custom_call.1} parent=1 // pred_fallthru
      _
    // Predicated region
    $region26: #{tpu_custom_call.1} parent=1 // pred_check
      _
    $region27: #{tpu_custom_call.1} parent=1 // pred_check_branch
      %72 = sbr.rel (0) target = $region29
    $region28: #{tpu_custom_call.1} parent=1 // pred_region
      %s74 = ssub.s32 1024, 1024
      %75 = vsyncadd [#allocation9], %s74
      %s76 = sshll.u32 [#allocation10], 4
      %s77 = int_to_ptr.vmem [resolvable:$true] %s76
      %82 = dma.hbm_to_vmem [thread:$0]  %s6, 1024, %s77, [#allocation9], 64, 64, 4
    $region29: #{tpu_custom_call.1} parent=1 // pred_fallthru
      _
    // Predicated region
    $region30: #{tpu_custom_call.1} parent=1 // pred_check
      _
    $region31: #{tpu_custom_call.1} parent=1 // pred_check_branch
      %84 = sbr.rel (0) target = $region33
    $region32: #{tpu_custom_call.1} parent=1 // pred_region
      %s86 = ssub.s32 1024, 1024
      %87 = vsyncadd [#allocation12], %s86
      %s88 = sshll.u32 [#allocation11], 4
      %s89 = int_to_ptr.vmem [resolvable:$true] %s88
      %94 = dma.hbm_to_vmem [thread:$0]  %s7, 1024, %s89, [#allocation12], 64, 64, 4
    $region33: #{tpu_custom_call.1} parent=1 // pred_fallthru
      _
    // Predicated region
    $region34: #{tpu_custom_call.1} parent=1 // pred_check
      _
    $region35: #{tpu_custom_call.1} parent=1 // pred_check_branch
      %96 = sbr.rel (0) target = $region37
    $region36: #{tpu_custom_call.1} parent=1 // pred_region
      _
    $region37: #{tpu_custom_call.1} parent=1 // pred_fallthru
      _
    // Predicated region
    $region38: #{tpu_custom_call.1} parent=1 // pred_check
      _
    $region39: #{tpu_custom_call.1} parent=1 // pred_check_branch
      %98 = sbr.rel (0) target = $region41
    $region40: #{tpu_custom_call.1} parent=1 // pred_region
      %99 = dma.done [#allocation3], 8192
    $region41: #{tpu_custom_call.1} parent=1 // pred_fallthru
      _
    // Predicated region
    $region42: #{tpu_custom_call.1} parent=1 // pred_check
      _
    $region43: #{tpu_custom_call.1} parent=1 // pred_check_branch
      %101 = sbr.rel (0) target = $region45
    $region44: #{tpu_custom_call.1} parent=1 // pred_region
      %102 = dma.done [#allocation6], 256
    $region45: #{tpu_custom_call.1} parent=1 // pred_fallthru
      _
    // Predicated region
    $region46: #{tpu_custom_call.1} parent=1 // pred_check
      _
    $region47: #{tpu_custom_call.1} parent=1 // pred_check_branch
      %104 = sbr.rel (0) target = $region49
    $region48: #{tpu_custom_call.1} parent=1 // pred_region
      %105 = dma.done [#allocation6], 32768
    $region49: #{tpu_custom_call.1} parent=1 // pred_fallthru
      _
    // Predicated region
    $region50: #{tpu_custom_call.1} parent=1 // pred_check
      _
    $region51: #{tpu_custom_call.1} parent=1 // pred_check_branch
      %107 = sbr.rel (0) target = $region53
    $region52: #{tpu_custom_call.1} parent=1 // pred_region
      %108 = dma.done [#allocation9], 1024
    $region53: #{tpu_custom_call.1} parent=1 // pred_fallthru
      _
    // Predicated region
    $region54: #{tpu_custom_call.1} parent=1 // pred_check
      _
    $region55: #{tpu_custom_call.1} parent=1 // pred_check_branch
      %110 = sbr.rel (0) target = $region57
    $region56: #{tpu_custom_call.1} parent=1 // pred_region
      %111 = dma.done [#allocation9], 1024
    $region57: #{tpu_custom_call.1} parent=1 // pred_fallthru
      _
    // Predicated region
    $region58: #{tpu_custom_call.1} parent=1 // pred_check
      _
    $region59: #{tpu_custom_call.1} parent=1 // pred_check_branch
      %113 = sbr.rel (0) target = $region61
    $region60: #{tpu_custom_call.1} parent=1 // pred_region
      %114 = dma.done [#allocation12], 1024
    $region61: #{tpu_custom_call.1} parent=1 // pred_fallthru
      _
    %v116 = vld [vmem:[#allocation2] sm:$0xff]
    %v117 = vld [vmem:[#allocation2 + $0x8] sm:$0xff]
    %v118 = vld [vmem:[#allocation2 + $0x10] sm:$0xff]
    %v119 = vld [vmem:[#allocation2 + $0x18] sm:$0xff]
    %v120 = vld [vmem:[#allocation2 + $0x20] sm:$0xff]
    %v121 = vld [vmem:[#allocation2 + $0x28] sm:$0xff]
    %v122 = vld [vmem:[#allocation2 + $0x30] sm:$0xff]
    %v123 = vld [vmem:[#allocation2 + $0x38] sm:$0xff]
    %v124 = vld [vmem:[#allocation2 + $0x40] sm:$0xff]
    %v125 = vld [vmem:[#allocation2 + $0x48] sm:$0xff]
    %v126 = vld [vmem:[#allocation2 + $0x50] sm:$0xff]
    %v127 = vld [vmem:[#allocation2 + $0x58] sm:$0xff]
    %v128 = vld [vmem:[#allocation2 + $0x60] sm:$0xff]
    %v129 = vld [vmem:[#allocation2 + $0x68] sm:$0xff]
    %v130 = vld [vmem:[#allocation2 + $0x70] sm:$0xff]
    %v131 = vld [vmem:[#allocation2 + $0x78] sm:$0xff]
    %v132 = vld [vmem:[#allocation2 + $0x80] sm:$0xff]
    %v133 = vld [vmem:[#allocation2 + $0x88] sm:$0xff]
    %v134 = vld [vmem:[#allocation2 + $0x90] sm:$0xff]
    %v135 = vld [vmem:[#allocation2 + $0x98] sm:$0xff]
    %v136 = vld [vmem:[#allocation2 + $0xa0] sm:$0xff]
    %v137 = vld [vmem:[#allocation2 + $0xa8] sm:$0xff]
    %v138 = vld [vmem:[#allocation2 + $0xb0] sm:$0xff]
    %v139 = vld [vmem:[#allocation2 + $0xb8] sm:$0xff]
    %v140 = vld [vmem:[#allocation2 + $0xc0] sm:$0xff]
    %v141 = vld [vmem:[#allocation2 + $0xc8] sm:$0xff]
    %v142 = vld [vmem:[#allocation2 + $0xd0] sm:$0xff]
    %v143 = vld [vmem:[#allocation2 + $0xd8] sm:$0xff]
    %v144 = vld [vmem:[#allocation2 + $0xe0] sm:$0xff]
    %v145 = vld [vmem:[#allocation2 + $0xe8] sm:$0xff]
    %v146 = vld [vmem:[#allocation2 + $0xf0] sm:$0xff]
    %v147 = vld [vmem:[#allocation2 + $0xf8] sm:$0xff]
    %v148 = vld [vmem:[#allocation2 + $0x100] sm:$0xff]
    %v149 = vld [vmem:[#allocation2 + $0x108] sm:$0xff]
    %v150 = vld [vmem:[#allocation2 + $0x110] sm:$0xff]
    %v151 = vld [vmem:[#allocation2 + $0x118] sm:$0xff]
    %v152 = vld [vmem:[#allocation2 + $0x120] sm:$0xff]
    %v153 = vld [vmem:[#allocation2 + $0x128] sm:$0xff]
    %v154 = vld [vmem:[#allocation2 + $0x130] sm:$0xff]
    %v155 = vld [vmem:[#allocation2 + $0x138] sm:$0xff]
    %v156 = vld [vmem:[#allocation2 + $0x140] sm:$0xff]
    %v157 = vld [vmem:[#allocation2 + $0x148] sm:$0xff]
    %v158 = vld [vmem:[#allocation2 + $0x150] sm:$0xff]
    %v159 = vld [vmem:[#allocation2 + $0x158] sm:$0xff]
    %v160 = vld [vmem:[#allocation2 + $0x160] sm:$0xff]
    %v161 = vld [vmem:[#allocation2 + $0x168] sm:$0xff]
    %v162 = vld [vmem:[#allocation2 + $0x170] sm:$0xff]
    %v163 = vld [vmem:[#allocation2 + $0x178] sm:$0xff]
    %v164 = vld [vmem:[#allocation2 + $0x180] sm:$0xff]
    %v165 = vld [vmem:[#allocation2 + $0x188] sm:$0xff]
    %v166 = vld [vmem:[#allocation2 + $0x190] sm:$0xff]
    %v167 = vld [vmem:[#allocation2 + $0x198] sm:$0xff]
    %v168 = vld [vmem:[#allocation2 + $0x1a0] sm:$0xff]
    %v169 = vld [vmem:[#allocation2 + $0x1a8] sm:$0xff]
    %v170 = vld [vmem:[#allocation2 + $0x1b0] sm:$0xff]
    %v171 = vld [vmem:[#allocation2 + $0x1b8] sm:$0xff]
    %v172 = vld [vmem:[#allocation2 + $0x1c0] sm:$0xff]
    %v173 = vld [vmem:[#allocation2 + $0x1c8] sm:$0xff]
    %v174 = vld [vmem:[#allocation2 + $0x1d0] sm:$0xff]
    %v175 = vld [vmem:[#allocation2 + $0x1d8] sm:$0xff]
    %v176 = vld [vmem:[#allocation2 + $0x1e0] sm:$0xff]
    %v177 = vld [vmem:[#allocation2 + $0x1e8] sm:$0xff]
    %v178 = vld [vmem:[#allocation2 + $0x1f0] sm:$0xff]
    %v179 = vld [vmem:[#allocation2 + $0x1f8] sm:$0xff]
    %v180 = vpack.c.bf16 %v148, %v116
    %v181 = vpack.c.bf16 %v149, %v117
    %v182 = vpack.c.bf16 %v150, %v118
    %v183 = vpack.c.bf16 %v151, %v119
    %v184 = vpack.c.bf16 %v152, %v120
    %v185 = vpack.c.bf16 %v153, %v121
    %v186 = vpack.c.bf16 %v154, %v122
    %v187 = vpack.c.bf16 %v155, %v123
    %v188 = vpack.c.bf16 %v156, %v124
    %v189 = vpack.c.bf16 %v157, %v125
    %v190 = vpack.c.bf16 %v158, %v126
    %v191 = vpack.c.bf16 %v159, %v127
    %v192 = vpack.c.bf16 %v160, %v128
    %v193 = vpack.c.bf16 %v161, %v129
    %v194 = vpack.c.bf16 %v162, %v130
    %v195 = vpack.c.bf16 %v163, %v131
    %v196 = vpack.c.bf16 %v164, %v132
    %v197 = vpack.c.bf16 %v165, %v133
    %v198 = vpack.c.bf16 %v166, %v134
    %v199 = vpack.c.bf16 %v167, %v135
    %v200 = vpack.c.bf16 %v168, %v136
    %v201 = vpack.c.bf16 %v169, %v137
    %v202 = vpack.c.bf16 %v170, %v138
    %v203 = vpack.c.bf16 %v171, %v139
    %v204 = vpack.c.bf16 %v172, %v140
    %v205 = vpack.c.bf16 %v173, %v141
    %v206 = vpack.c.bf16 %v174, %v142
    %v207 = vpack.c.bf16 %v175, %v143
    %v208 = vpack.c.bf16 %v176, %v144
    %v209 = vpack.c.bf16 %v177, %v145
    %v210 = vpack.c.bf16 %v178, %v146
    %v211 = vpack.c.bf16 %v179, %v147
    %v212 = vld [vmem:[#allocation5] sm:$0xff]
    %v213 = vld [vmem:[#allocation5 + $0x8] sm:$0xff]
    %v214 = vpack.c.bf16 %v213, %v212
    %v215 = vld [vmem:[#allocation7] sm:$0xf]
    %v216 = vld [vmem:[#allocation7 + $0x4] sm:$0xf]
    %v217 = vld [vmem:[#allocation7 + $0x8] sm:$0xf]
    %v218 = vld [vmem:[#allocation7 + $0xc] sm:$0xf]
    %v219 = vld [vmem:[#allocation7 + $0x10] sm:$0xf]
    %v220 = vld [vmem:[#allocation7 + $0x14] sm:$0xf]
    %v221 = vld [vmem:[#allocation7 + $0x18] sm:$0xf]
    %v222 = vld [vmem:[#allocation7 + $0x1c] sm:$0xf]
    %v223 = vld [vmem:[#allocation7 + $0x20] sm:$0xf]
    %v224 = vld [vmem:[#allocation7 + $0x24] sm:$0xf]
    %v225 = vld [vmem:[#allocation7 + $0x28] sm:$0xf]
    %v226 = vld [vmem:[#allocation7 + $0x2c] sm:$0xf]
    %v227 = vld [vmem:[#allocation7 + $0x30] sm:$0xf]
    %v228 = vld [vmem:[#allocation7 + $0x34] sm:$0xf]
    %v229 = vld [vmem:[#allocation7 + $0x38] sm:$0xf]
    %v230 = vld [vmem:[#allocation7 + $0x3c] sm:$0xf]
    %v231 = vld [vmem:[#allocation7 + $0x40] sm:$0xf]
    %v232 = vld [vmem:[#allocation7 + $0x44] sm:$0xf]
    %v233 = vld [vmem:[#allocation7 + $0x48] sm:$0xf]
    %v234 = vld [vmem:[#allocation7 + $0x4c] sm:$0xf]
    %v235 = vld [vmem:[#allocation7 + $0x50] sm:$0xf]
    %v236 = vld [vmem:[#allocation7 + $0x54] sm:$0xf]
    %v237 = vld [vmem:[#allocation7 + $0x58] sm:$0xf]
    %v238 = vld [vmem:[#allocation7 + $0x5c] sm:$0xf]
    %v239 = vld [vmem:[#allocation7 + $0x60] sm:$0xf]
    %v240 = vld [vmem:[#allocation7 + $0x64] sm:$0xf]
    %v241 = vld [vmem:[#allocation7 + $0x68] sm:$0xf]
    %v242 = vld [vmem:[#allocation7 + $0x6c] sm:$0xf]
    %v243 = vld [vmem:[#allocation7 + $0x70] sm:$0xf]
    %v244 = vld [vmem:[#allocation7 + $0x74] sm:$0xf]
    %v245 = vld [vmem:[#allocation7 + $0x78] sm:$0xf]
    %v246 = vld [vmem:[#allocation7 + $0x7c] sm:$0xf]
    %v247 = vld [vmem:[#allocation7 + $0x80] sm:$0xf]
    %v248 = vld [vmem:[#allocation7 + $0x84] sm:$0xf]
    %v249 = vld [vmem:[#allocation7 + $0x88] sm:$0xf]
    %v250 = vld [vmem:[#allocation7 + $0x8c] sm:$0xf]
    %v251 = vld [vmem:[#allocation7 + $0x90] sm:$0xf]
    %v252 = vld [vmem:[#allocation7 + $0x94] sm:$0xf]
    %v253 = vld [vmem:[#allocation7 + $0x98] sm:$0xf]
    %v254 = vld [vmem:[#allocation7 + $0x9c] sm:$0xf]
    %v255 = vld [vmem:[#allocation7 + $0xa0] sm:$0xf]
    %v256 = vld [vmem:[#allocation7 + $0xa4] sm:$0xf]
    %v257 = vld [vmem:[#allocation7 + $0xa8] sm:$0xf]
    %v258 = vld [vmem:[#allocation7 + $0xac] sm:$0xf]
    %v259 = vld [vmem:[#allocation7 + $0xb0] sm:$0xf]
    %v260 = vld [vmem:[#allocation7 + $0xb4] sm:$0xf]
    %v261 = vld [vmem:[#allocation7 + $0xb8] sm:$0xf]
    %v262 = vld [vmem:[#allocation7 + $0xbc] sm:$0xf]
    %v263 = vld [vmem:[#allocation7 + $0xc0] sm:$0xf]
    %v264 = vld [vmem:[#allocation7 + $0xc4] sm:$0xf]
    %v265 = vld [vmem:[#allocation7 + $0xc8] sm:$0xf]
    %v266 = vld [vmem:[#allocation7 + $0xcc] sm:$0xf]
    %v267 = vld [vmem:[#allocation7 + $0xd0] sm:$0xf]
    %v268 = vld [vmem:[#allocation7 + $0xd4] sm:$0xf]
    %v269 = vld [vmem:[#allocation7 + $0xd8] sm:$0xf]
    %v270 = vld [vmem:[#allocation7 + $0xdc] sm:$0xf]
    %v271 = vld [vmem:[#allocation7 + $0xe0] sm:$0xf]
    %v272 = vld [vmem:[#allocation7 + $0xe4] sm:$0xf]
    %v273 = vld [vmem:[#allocation7 + $0xe8] sm:$0xf]
    %v274 = vld [vmem:[#allocation7 + $0xec] sm:$0xf]
    %v275 = vld [vmem:[#allocation7 + $0xf0] sm:$0xf]
    %v276 = vld [vmem:[#allocation7 + $0xf4] sm:$0xf]
    %v277 = vld [vmem:[#allocation7 + $0xf8] sm:$0xf]
    %v278 = vld [vmem:[#allocation7 + $0xfc] sm:$0xf]
    %v279 = vld [vmem:[#allocation7 + $0x100] sm:$0xf]
    %v280 = vld [vmem:[#allocation7 + $0x104] sm:$0xf]
    %v281 = vld [vmem:[#allocation7 + $0x108] sm:$0xf]
    %v282 = vld [vmem:[#allocation7 + $0x10c] sm:$0xf]
    %v283 = vld [vmem:[#allocation7 + $0x110] sm:$0xf]
    %v284 = vld [vmem:[#allocation7 + $0x114] sm:$0xf]
    %v285 = vld [vmem:[#allocation7 + $0x118] sm:$0xf]
    %v286 = vld [vmem:[#allocation7 + $0x11c] sm:$0xf]
    %v287 = vld [vmem:[#allocation7 + $0x120] sm:$0xf]
    %v288 = vld [vmem:[#allocation7 + $0x124] sm:$0xf]
    %v289 = vld [vmem:[#allocation7 + $0x128] sm:$0xf]
    %v290 = vld [vmem:[#allocation7 + $0x12c] sm:$0xf]
    %v291 = vld [vmem:[#allocation7 + $0x130] sm:$0xf]
    %v292 = vld [vmem:[#allocation7 + $0x134] sm:$0xf]
    %v293 = vld [vmem:[#allocation7 + $0x138] sm:$0xf]
    %v294 = vld [vmem:[#allocation7 + $0x13c] sm:$0xf]
    %v295 = vld [vmem:[#allocation7 + $0x140] sm:$0xf]
    %v296 = vld [vmem:[#allocation7 + $0x144] sm:$0xf]
    %v297 = vld [vmem:[#allocation7 + $0x148] sm:$0xf]
    %v298 = vld [vmem:[#allocation7 + $0x14c] sm:$0xf]
    %v299 = vld [vmem:[#allocation7 + $0x150] sm:$0xf]
    %v300 = vld [vmem:[#allocation7 + $0x154] sm:$0xf]
    %v301 = vld [vmem:[#allocation7 + $0x158] sm:$0xf]
    %v302 = vld [vmem:[#allocation7 + $0x15c] sm:$0xf]
    %v303 = vld [vmem:[#allocation7 + $0x160] sm:$0xf]
    %v304 = vld [vmem:[#allocation7 + $0x164] sm:$0xf]
    %v305 = vld [vmem:[#allocation7 + $0x168] sm:$0xf]
    %v306 = vld [vmem:[#allocation7 + $0x16c] sm:$0xf]
    %v307 = vld [vmem:[#allocation7 + $0x170] sm:$0xf]
    %v308 = vld [vmem:[#allocation7 + $0x174] sm:$0xf]
    %v309 = vld [vmem:[#allocation7 + $0x178] sm:$0xf]
    %v310 = vld [vmem:[#allocation7 + $0x17c] sm:$0xf]
    %v311 = vld [vmem:[#allocation7 + $0x180] sm:$0xf]
    %v312 = vld [vmem:[#allocation7 + $0x184] sm:$0xf]
    %v313 = vld [vmem:[#allocation7 + $0x188] sm:$0xf]
    %v314 = vld [vmem:[#allocation7 + $0x18c] sm:$0xf]
    %v315 = vld [vmem:[#allocation7 + $0x190] sm:$0xf]
    %v316 = vld [vmem:[#allocation7 + $0x194] sm:$0xf]
    %v317 = vld [vmem:[#allocation7 + $0x198] sm:$0xf]
    %v318 = vld [vmem:[#allocation7 + $0x19c] sm:$0xf]
    %v319 = vld [vmem:[#allocation7 + $0x1a0] sm:$0xf]
    %v320 = vld [vmem:[#allocation7 + $0x1a4] sm:$0xf]
    %v321 = vld [vmem:[#allocation7 + $0x1a8] sm:$0xf]
    %v322 = vld [vmem:[#allocation7 + $0x1ac] sm:$0xf]
    %v323 = vld [vmem:[#allocation7 + $0x1b0] sm:$0xf]
    %v324 = vld [vmem:[#allocation7 + $0x1b4] sm:$0xf]
    %v325 = vld [vmem:[#allocation7 + $0x1b8] sm:$0xf]
    %v326 = vld [vmem:[#allocation7 + $0x1bc] sm:$0xf]
    %v327 = vld [vmem:[#allocation7 + $0x1c0] sm:$0xf]
    %v328 = vld [vmem:[#allocation7 + $0x1c4] sm:$0xf]
    %v329 = vld [vmem:[#allocation7 + $0x1c8] sm:$0xf]
    %v330 = vld [vmem:[#allocation7 + $0x1cc] sm:$0xf]
    %v331 = vld [vmem:[#allocation7 + $0x1d0] sm:$0xf]
    %v332 = vld [vmem:[#allocation7 + $0x1d4] sm:$0xf]
    %v333 = vld [vmem:[#allocation7 + $0x1d8] sm:$0xf]
    %v334 = vld [vmem:[#allocation7 + $0x1dc] sm:$0xf]
    %v335 = vld [vmem:[#allocation7 + $0x1e0] sm:$0xf]
    %v336 = vld [vmem:[#allocation7 + $0x1e4] sm:$0xf]
    %v337 = vld [vmem:[#allocation7 + $0x1e8] sm:$0xf]
    %v338 = vld [vmem:[#allocation7 + $0x1ec] sm:$0xf]
    %v339 = vld [vmem:[#allocation7 + $0x1f0] sm:$0xf]
    %v340 = vld [vmem:[#allocation7 + $0x1f4] sm:$0xf]
    %v341 = vld [vmem:[#allocation7 + $0x1f8] sm:$0xf]
    %v342 = vld [vmem:[#allocation7 + $0x1fc] sm:$0xf]
    %v343 = vld [vmem:[#allocation7 + $0x200] sm:$0xf]
    %v344 = vld [vmem:[#allocation7 + $0x204] sm:$0xf]
    %v345 = vld [vmem:[#allocation7 + $0x208] sm:$0xf]
    %v346 = vld [vmem:[#allocation7 + $0x20c] sm:$0xf]
    %v347 = vld [vmem:[#allocation7 + $0x210] sm:$0xf]
    %v348 = vld [vmem:[#allocation7 + $0x214] sm:$0xf]
    %v349 = vld [vmem:[#allocation7 + $0x218] sm:$0xf]
    %v350 = vld [vmem:[#allocation7 + $0x21c] sm:$0xf]
    %v351 = vld [vmem:[#allocation7 + $0x220] sm:$0xf]
    %v352 = vld [vmem:[#allocation7 + $0x224] sm:$0xf]
    %v353 = vld [vmem:[#allocation7 + $0x228] sm:$0xf]
    %v354 = vld [vmem:[#allocation7 + $0x22c] sm:$0xf]
    %v355 = vld [vmem:[#allocation7 + $0x230] sm:$0xf]
    %v356 = vld [vmem:[#allocation7 + $0x234] sm:$0xf]
    %v357 = vld [vmem:[#allocation7 + $0x238] sm:$0xf]
    %v358 = vld [vmem:[#allocation7 + $0x23c] sm:$0xf]
    %v359 = vld [vmem:[#allocation7 + $0x240] sm:$0xf]
    %v360 = vld [vmem:[#allocation7 + $0x244] sm:$0xf]
    %v361 = vld [vmem:[#allocation7 + $0x248] sm:$0xf]
    %v362 = vld [vmem:[#allocation7 + $0x24c] sm:$0xf]
    %v363 = vld [vmem:[#allocation7 + $0x250] sm:$0xf]
    %v364 = vld [vmem:[#allocation7 + $0x254] sm:$0xf]
    %v365 = vld [vmem:[#allocation7 + $0x258] sm:$0xf]
    %v366 = vld [vmem:[#allocation7 + $0x25c] sm:$0xf]
    %v367 = vld [vmem:[#allocation7 + $0x260] sm:$0xf]
    %v368 = vld [vmem:[#allocation7 + $0x264] sm:$0xf]
    %v369 = vld [vmem:[#allocation7 + $0x268] sm:$0xf]
    %v370 = vld [vmem:[#allocation7 + $0x26c] sm:$0xf]
    %v371 = vld [vmem:[#allocation7 + $0x270] sm:$0xf]
    %v372 = vld [vmem:[#allocation7 + $0x274] sm:$0xf]
    %v373 = vld [vmem:[#allocation7 + $0x278] sm:$0xf]
    %v374 = vld [vmem:[#allocation7 + $0x27c] sm:$0xf]
    %v375 = vld [vmem:[#allocation7 + $0x280] sm:$0xf]
    %v376 = vld [vmem:[#allocation7 + $0x284] sm:$0xf]
    %v377 = vld [vmem:[#allocation7 + $0x288] sm:$0xf]
    %v378 = vld [vmem:[#allocation7 + $0x28c] sm:$0xf]
    %v379 = vld [vmem:[#allocation7 + $0x290] sm:$0xf]
    %v380 = vld [vmem:[#allocation7 + $0x294] sm:$0xf]
    %v381 = vld [vmem:[#allocation7 + $0x298] sm:$0xf]
    %v382 = vld [vmem:[#allocation7 + $0x29c] sm:$0xf]
    %v383 = vld [vmem:[#allocation7 + $0x2a0] sm:$0xf]
    %v384 = vld [vmem:[#allocation7 + $0x2a4] sm:$0xf]
    %v385 = vld [vmem:[#allocation7 + $0x2a8] sm:$0xf]
    %v386 = vld [vmem:[#allocation7 + $0x2ac] sm:$0xf]
    %v387 = vld [vmem:[#allocation7 + $0x2b0] sm:$0xf]
    %v388 = vld [vmem:[#allocation7 + $0x2b4] sm:$0xf]
    %v389 = vld [vmem:[#allocation7 + $0x2b8] sm:$0xf]
    %v390 = vld [vmem:[#allocation7 + $0x2bc] sm:$0xf]
    %v391 = vld [vmem:[#allocation7 + $0x2c0] sm:$0xf]
    %v392 = vld [vmem:[#allocation7 + $0x2c4] sm:$0xf]
    %v393 = vld [vmem:[#allocation7 + $0x2c8] sm:$0xf]
    %v394 = vld [vmem:[#allocation7 + $0x2cc] sm:$0xf]
    %v395 = vld [vmem:[#allocation7 + $0x2d0] sm:$0xf]
    %v396 = vld [vmem:[#allocation7 + $0x2d4] sm:$0xf]
    %v397 = vld [vmem:[#allocation7 + $0x2d8] sm:$0xf]
    %v398 = vld [vmem:[#allocation7 + $0x2dc] sm:$0xf]
    %v399 = vld [vmem:[#allocation7 + $0x2e0] sm:$0xf]
    %v400 = vld [vmem:[#allocation7 + $0x2e4] sm:$0xf]
    %v401 = vld [vmem:[#allocation7 + $0x2e8] sm:$0xf]
    %v402 = vld [vmem:[#allocation7 + $0x2ec] sm:$0xf]
    %v403 = vld [vmem:[#allocation7 + $0x2f0] sm:$0xf]
    %v404 = vld [vmem:[#allocation7 + $0x2f4] sm:$0xf]
    %v405 = vld [vmem:[#allocation7 + $0x2f8] sm:$0xf]
    %v406 = vld [vmem:[#allocation7 + $0x2fc] sm:$0xf]
    %v407 = vld [vmem:[#allocation7 + $0x300] sm:$0xf]
    %v408 = vld [vmem:[#allocation7 + $0x304] sm:$0xf]
    %v409 = vld [vmem:[#allocation7 + $0x308] sm:$0xf]
    %v410 = vld [vmem:[#allocation7 + $0x30c] sm:$0xf]
    %v411 = vld [vmem:[#allocation7 + $0x310] sm:$0xf]
    %v412 = vld [vmem:[#allocation7 + $0x314] sm:$0xf]
    %v413 = vld [vmem:[#allocation7 + $0x318] sm:$0xf]
    %v414 = vld [vmem:[#allocation7 + $0x31c] sm:$0xf]
    %v415 = vld [vmem:[#allocation7 + $0x320] sm:$0xf]
    %v416 = vld [vmem:[#allocation7 + $0x324] sm:$0xf]
    %v417 = vld [vmem:[#allocation7 + $0x328] sm:$0xf]
    %v418 = vld [vmem:[#allocation7 + $0x32c] sm:$0xf]
    %v419 = vld [vmem:[#allocation7 + $0x330] sm:$0xf]
    %v420 = vld [vmem:[#allocation7 + $0x334] sm:$0xf]
    %v421 = vld [vmem:[#allocation7 + $0x338] sm:$0xf]
    %v422 = vld [vmem:[#allocation7 + $0x33c] sm:$0xf]
    %v423 = vld [vmem:[#allocation7 + $0x340] sm:$0xf]
    %v424 = vld [vmem:[#allocation7 + $0x344] sm:$0xf]
    %v425 = vld [vmem:[#allocation7 + $0x348] sm:$0xf]
    %v426 = vld [vmem:[#allocation7 + $0x34c] sm:$0xf]
    %v427 = vld [vmem:[#allocation7 + $0x350] sm:$0xf]
    %v428 = vld [vmem:[#allocation7 + $0x354] sm:$0xf]
    %v429 = vld [vmem:[#allocation7 + $0x358] sm:$0xf]
    %v430 = vld [vmem:[#allocation7 + $0x35c] sm:$0xf]
    %v431 = vld [vmem:[#allocation7 + $0x360] sm:$0xf]
    %v432 = vld [vmem:[#allocation7 + $0x364] sm:$0xf]
    %v433 = vld [vmem:[#allocation7 + $0x368] sm:$0xf]
    %v434 = vld [vmem:[#allocation7 + $0x36c] sm:$0xf]
    %v435 = vld [vmem:[#allocation7 + $0x370] sm:$0xf]
    %v436 = vld [vmem:[#allocation7 + $0x374] sm:$0xf]
    %v437 = vld [vmem:[#allocation7 + $0x378] sm:$0xf]
    %v438 = vld [vmem:[#allocation7 + $0x37c] sm:$0xf]
    %v439 = vld [vmem:[#allocation7 + $0x380] sm:$0xf]
    %v440 = vld [vmem:[#allocation7 + $0x384] sm:$0xf]
    %v441 = vld [vmem:[#allocation7 + $0x388] sm:$0xf]
    %v442 = vld [vmem:[#allocation7 + $0x38c] sm:$0xf]
    %v443 = vld [vmem:[#allocation7 + $0x390] sm:$0xf]
    %v444 = vld [vmem:[#allocation7 + $0x394] sm:$0xf]
    %v445 = vld [vmem:[#allocation7 + $0x398] sm:$0xf]
    %v446 = vld [vmem:[#allocation7 + $0x39c] sm:$0xf]
    %v447 = vld [vmem:[#allocation7 + $0x3a0] sm:$0xf]
    %v448 = vld [vmem:[#allocation7 + $0x3a4] sm:$0xf]
    %v449 = vld [vmem:[#allocation7 + $0x3a8] sm:$0xf]
    %v450 = vld [vmem:[#allocation7 + $0x3ac] sm:$0xf]
    %v451 = vld [vmem:[#allocation7 + $0x3b0] sm:$0xf]
    %v452 = vld [vmem:[#allocation7 + $0x3b4] sm:$0xf]
    %v453 = vld [vmem:[#allocation7 + $0x3b8] sm:$0xf]
    %v454 = vld [vmem:[#allocation7 + $0x3bc] sm:$0xf]
    %v455 = vld [vmem:[#allocation7 + $0x3c0] sm:$0xf]
    %v456 = vld [vmem:[#allocation7 + $0x3c4] sm:$0xf]
    %v457 = vld [vmem:[#allocation7 + $0x3c8] sm:$0xf]
    %v458 = vld [vmem:[#allocation7 + $0x3cc] sm:$0xf]
    %v459 = vld [vmem:[#allocation7 + $0x3d0] sm:$0xf]
    %v460 = vld [vmem:[#allocation7 + $0x3d4] sm:$0xf]
    %v461 = vld [vmem:[#allocation7 + $0x3d8] sm:$0xf]
    %v462 = vld [vmem:[#allocation7 + $0x3dc] sm:$0xf]
    %v463 = vld [vmem:[#allocation7 + $0x3e0] sm:$0xf]
    %v464 = vld [vmem:[#allocation7 + $0x3e4] sm:$0xf]
    %v465 = vld [vmem:[#allocation7 + $0x3e8] sm:$0xf]
    %v466 = vld [vmem:[#allocation7 + $0x3ec] sm:$0xf]
    %v467 = vld [vmem:[#allocation7 + $0x3f0] sm:$0xf]
    %v468 = vld [vmem:[#allocation7 + $0x3f4] sm:$0xf]
    %v469 = vld [vmem:[#allocation7 + $0x3f8] sm:$0xf]
    %v470 = vld [vmem:[#allocation7 + $0x3fc] sm:$0xf]
    %v471 = vld [vmem:[#allocation7 + $0x400] sm:$0xf]
    %v472 = vld [vmem:[#allocation7 + $0x404] sm:$0xf]
    %v473 = vld [vmem:[#allocation7 + $0x408] sm:$0xf]
    %v474 = vld [vmem:[#allocation7 + $0x40c] sm:$0xf]
    %v475 = vld [vmem:[#allocation7 + $0x410] sm:$0xf]
    %v476 = vld [vmem:[#allocation7 + $0x414] sm:$0xf]
    %v477 = vld [vmem:[#allocation7 + $0x418] sm:$0xf]
    %v478 = vld [vmem:[#allocation7 + $0x41c] sm:$0xf]
    %v479 = vld [vmem:[#allocation7 + $0x420] sm:$0xf]
    %v480 = vld [vmem:[#allocation7 + $0x424] sm:$0xf]
    %v481 = vld [vmem:[#allocation7 + $0x428] sm:$0xf]
    %v482 = vld [vmem:[#allocation7 + $0x42c] sm:$0xf]
    %v483 = vld [vmem:[#allocation7 + $0x430] sm:$0xf]
    %v484 = vld [vmem:[#allocation7 + $0x434] sm:$0xf]
    %v485 = vld [vmem:[#allocation7 + $0x438] sm:$0xf]
    %v486 = vld [vmem:[#allocation7 + $0x43c] sm:$0xf]
    %v487 = vld [vmem:[#allocation7 + $0x440] sm:$0xf]
    %v488 = vld [vmem:[#allocation7 + $0x444] sm:$0xf]
    %v489 = vld [vmem:[#allocation7 + $0x448] sm:$0xf]
    %v490 = vld [vmem:[#allocation7 + $0x44c] sm:$0xf]
    %v491 = vld [vmem:[#allocation7 + $0x450] sm:$0xf]
    %v492 = vld [vmem:[#allocation7 + $0x454] sm:$0xf]
    %v493 = vld [vmem:[#allocation7 + $0x458] sm:$0xf]
    %v494 = vld [vmem:[#allocation7 + $0x45c] sm:$0xf]
    %v495 = vld [vmem:[#allocation7 + $0x460] sm:$0xf]
    %v496 = vld [vmem:[#allocation7 + $0x464] sm:$0xf]
    %v497 = vld [vmem:[#allocation7 + $0x468] sm:$0xf]
    %v498 = vld [vmem:[#allocation7 + $0x46c] sm:$0xf]
    %v499 = vld [vmem:[#allocation7 + $0x470] sm:$0xf]
    %v500 = vld [vmem:[#allocation7 + $0x474] sm:$0xf]
    %v501 = vld [vmem:[#allocation7 + $0x478] sm:$0xf]
    %v502 = vld [vmem:[#allocation7 + $0x47c] sm:$0xf]
    %v503 = vld [vmem:[#allocation7 + $0x480] sm:$0xf]
    %v504 = vld [vmem:[#allocation7 + $0x484] sm:$0xf]
    %v505 = vld [vmem:[#allocation7 + $0x488] sm:$0xf]
    %v506 = vld [vmem:[#allocation7 + $0x48c] sm:$0xf]
    %v507 = vld [vmem:[#allocation7 + $0x490] sm:$0xf]
    %v508 = vld [vmem:[#allocation7 + $0x494] sm:$0xf]
    %v509 = vld [vmem:[#allocation7 + $0x498] sm:$0xf]
    %v510 = vld [vmem:[#allocation7 + $0x49c] sm:$0xf]
    %v511 = vld [vmem:[#allocation7 + $0x4a0] sm:$0xf]
    %v512 = vld [vmem:[#allocation7 + $0x4a4] sm:$0xf]
    %v513 = vld [vmem:[#allocation7 + $0x4a8] sm:$0xf]
    %v514 = vld [vmem:[#allocation7 + $0x4ac] sm:$0xf]
    %v515 = vld [vmem:[#allocation7 + $0x4b0] sm:$0xf]
    %v516 = vld [vmem:[#allocation7 + $0x4b4] sm:$0xf]
    %v517 = vld [vmem:[#allocation7 + $0x4b8] sm:$0xf]
    %v518 = vld [vmem:[#allocation7 + $0x4bc] sm:$0xf]
    %v519 = vld [vmem:[#allocation7 + $0x4c0] sm:$0xf]
    %v520 = vld [vmem:[#allocation7 + $0x4c4] sm:$0xf]
    %v521 = vld [vmem:[#allocation7 + $0x4c8] sm:$0xf]
    %v522 = vld [vmem:[#allocation7 + $0x4cc] sm:$0xf]
    %v523 = vld [vmem:[#allocation7 + $0x4d0] sm:$0xf]
    %v524 = vld [vmem:[#allocation7 + $0x4d4] sm:$0xf]
    %v525 = vld [vmem:[#allocation7 + $0x4d8] sm:$0xf]
    %v526 = vld [vmem:[#allocation7 + $0x4dc] sm:$0xf]
    %v527 = vld [vmem:[#allocation7 + $0x4e0] sm:$0xf]
    %v528 = vld [vmem:[#allocation7 + $0x4e4] sm:$0xf]
    %v529 = vld [vmem:[#allocation7 + $0x4e8] sm:$0xf]
    %v530 = vld [vmem:[#allocation7 + $0x4ec] sm:$0xf]
    %v531 = vld [vmem:[#allocation7 + $0x4f0] sm:$0xf]
    %v532 = vld [vmem:[#allocation7 + $0x4f4] sm:$0xf]
    %v533 = vld [vmem:[#allocation7 + $0x4f8] sm:$0xf]
    %v534 = vld [vmem:[#allocation7 + $0x4fc] sm:$0xf]
    %v535 = vld [vmem:[#allocation7 + $0x500] sm:$0xf]
    %v536 = vld [vmem:[#allocation7 + $0x504] sm:$0xf]
    %v537 = vld [vmem:[#allocation7 + $0x508] sm:$0xf]
    %v538 = vld [vmem:[#allocation7 + $0x50c] sm:$0xf]
    %v539 = vld [vmem:[#allocation7 + $0x510] sm:$0xf]
    %v540 = vld [vmem:[#allocation7 + $0x514] sm:$0xf]
    %v541 = vld [vmem:[#allocation7 + $0x518] sm:$0xf]
    %v542 = vld [vmem:[#allocation7 + $0x51c] sm:$0xf]
    %v543 = vld [vmem:[#allocation7 + $0x520] sm:$0xf]
    %v544 = vld [vmem:[#allocation7 + $0x524] sm:$0xf]
    %v545 = vld [vmem:[#allocation7 + $0x528] sm:$0xf]
    %v546 = vld [vmem:[#allocation7 + $0x52c] sm:$0xf]
    %v547 = vld [vmem:[#allocation7 + $0x530] sm:$0xf]
    %v548 = vld [vmem:[#allocation7 + $0x534] sm:$0xf]
    %v549 = vld [vmem:[#allocation7 + $0x538] sm:$0xf]
    %v550 = vld [vmem:[#allocation7 + $0x53c] sm:$0xf]
    %v551 = vld [vmem:[#allocation7 + $0x540] sm:$0xf]
    %v552 = vld [vmem:[#allocation7 + $0x544] sm:$0xf]
    %v553 = vld [vmem:[#allocation7 + $0x548] sm:$0xf]
    %v554 = vld [vmem:[#allocation7 + $0x54c] sm:$0xf]
    %v555 = vld [vmem:[#allocation7 + $0x550] sm:$0xf]
    %v556 = vld [vmem:[#allocation7 + $0x554] sm:$0xf]
    %v557 = vld [vmem:[#allocation7 + $0x558] sm:$0xf]
    %v558 = vld [vmem:[#allocation7 + $0x55c] sm:$0xf]
    %v559 = vld [vmem:[#allocation7 + $0x560] sm:$0xf]
    %v560 = vld [vmem:[#allocation7 + $0x564] sm:$0xf]
    %v561 = vld [vmem:[#allocation7 + $0x568] sm:$0xf]
    %v562 = vld [vmem:[#allocation7 + $0x56c] sm:$0xf]
    %v563 = vld [vmem:[#allocation7 + $0x570] sm:$0xf]
    %v564 = vld [vmem:[#allocation7 + $0x574] sm:$0xf]
    %v565 = vld [vmem:[#allocation7 + $0x578] sm:$0xf]
    %v566 = vld [vmem:[#allocation7 + $0x57c] sm:$0xf]
    %v567 = vld [vmem:[#allocation7 + $0x580] sm:$0xf]
    %v568 = vld [vmem:[#allocation7 + $0x584] sm:$0xf]
    %v569 = vld [vmem:[#allocation7 + $0x588] sm:$0xf]
    %v570 = vld [vmem:[#allocation7 + $0x58c] sm:$0xf]
    %v571 = vld [vmem:[#allocation7 + $0x590] sm:$0xf]
    %v572 = vld [vmem:[#allocation7 + $0x594] sm:$0xf]
    %v573 = vld [vmem:[#allocation7 + $0x598] sm:$0xf]
    %v574 = vld [vmem:[#allocation7 + $0x59c] sm:$0xf]
    %v575 = vld [vmem:[#allocation7 + $0x5a0] sm:$0xf]
    %v576 = vld [vmem:[#allocation7 + $0x5a4] sm:$0xf]
    %v577 = vld [vmem:[#allocation7 + $0x5a8] sm:$0xf]
    %v578 = vld [vmem:[#allocation7 + $0x5ac] sm:$0xf]
    %v579 = vld [vmem:[#allocation7 + $0x5b0] sm:$0xf]
    %v580 = vld [vmem:[#allocation7 + $0x5b4] sm:$0xf]
    %v581 = vld [vmem:[#allocation7 + $0x5b8] sm:$0xf]
    %v582 = vld [vmem:[#allocation7 + $0x5bc] sm:$0xf]
    %v583 = vld [vmem:[#allocation7 + $0x5c0] sm:$0xf]
    %v584 = vld [vmem:[#allocation7 + $0x5c4] sm:$0xf]
    %v585 = vld [vmem:[#allocation7 + $0x5c8] sm:$0xf]
    %v586 = vld [vmem:[#allocation7 + $0x5cc] sm:$0xf]
    %v587 = vld [vmem:[#allocation7 + $0x5d0] sm:$0xf]
    %v588 = vld [vmem:[#allocation7 + $0x5d4] sm:$0xf]
    %v589 = vld [vmem:[#allocation7 + $0x5d8] sm:$0xf]
    %v590 = vld [vmem:[#allocation7 + $0x5dc] sm:$0xf]
    %v591 = vld [vmem:[#allocation7 + $0x5e0] sm:$0xf]
    %v592 = vld [vmem:[#allocation7 + $0x5e4] sm:$0xf]
    %v593 = vld [vmem:[#allocation7 + $0x5e8] sm:$0xf]
    %v594 = vld [vmem:[#allocation7 + $0x5ec] sm:$0xf]
    %v595 = vld [vmem:[#allocation7 + $0x5f0] sm:$0xf]
    %v596 = vld [vmem:[#allocation7 + $0x5f4] sm:$0xf]
    %v597 = vld [vmem:[#allocation7 + $0x5f8] sm:$0xf]
    %v598 = vld [vmem:[#allocation7 + $0x5fc] sm:$0xf]
    %v599 = vld [vmem:[#allocation7 + $0x600] sm:$0xf]
    %v600 = vld [vmem:[#allocation7 + $0x604] sm:$0xf]
    %v601 = vld [vmem:[#allocation7 + $0x608] sm:$0xf]
    %v602 = vld [vmem:[#allocation7 + $0x60c] sm:$0xf]
    %v603 = vld [vmem:[#allocation7 + $0x610] sm:$0xf]
    %v604 = vld [vmem:[#allocation7 + $0x614] sm:$0xf]
    %v605 = vld [vmem:[#allocation7 + $0x618] sm:$0xf]
    %v606 = vld [vmem:[#allocation7 + $0x61c] sm:$0xf]
    %v607 = vld [vmem:[#allocation7 + $0x620] sm:$0xf]
    %v608 = vld [vmem:[#allocation7 + $0x624] sm:$0xf]
    %v609 = vld [vmem:[#allocation7 + $0x628] sm:$0xf]
    %v610 = vld [vmem:[#allocation7 + $0x62c] sm:$0xf]
    %v611 = vld [vmem:[#allocation7 + $0x630] sm:$0xf]
    %v612 = vld [vmem:[#allocation7 + $0x634] sm:$0xf]
    %v613 = vld [vmem:[#allocation7 + $0x638] sm:$0xf]
    %v614 = vld [vmem:[#allocation7 + $0x63c] sm:$0xf]
    %v615 = vld [vmem:[#allocation7 + $0x640] sm:$0xf]
    %v616 = vld [vmem:[#allocation7 + $0x644] sm:$0xf]
    %v617 = vld [vmem:[#allocation7 + $0x648] sm:$0xf]
    %v618 = vld [vmem:[#allocation7 + $0x64c] sm:$0xf]
    %v619 = vld [vmem:[#allocation7 + $0x650] sm:$0xf]
    %v620 = vld [vmem:[#allocation7 + $0x654] sm:$0xf]
    %v621 = vld [vmem:[#allocation7 + $0x658] sm:$0xf]
    %v622 = vld [vmem:[#allocation7 + $0x65c] sm:$0xf]
    %v623 = vld [vmem:[#allocation7 + $0x660] sm:$0xf]
    %v624 = vld [vmem:[#allocation7 + $0x664] sm:$0xf]
    %v625 = vld [vmem:[#allocation7 + $0x668] sm:$0xf]
    %v626 = vld [vmem:[#allocation7 + $0x66c] sm:$0xf]
    %v627 = vld [vmem:[#allocation7 + $0x670] sm:$0xf]
    %v628 = vld [vmem:[#allocation7 + $0x674] sm:$0xf]
    %v629 = vld [vmem:[#allocation7 + $0x678] sm:$0xf]
    %v630 = vld [vmem:[#allocation7 + $0x67c] sm:$0xf]
    %v631 = vld [vmem:[#allocation7 + $0x680] sm:$0xf]
    %v632 = vld [vmem:[#allocation7 + $0x684] sm:$0xf]
    %v633 = vld [vmem:[#allocation7 + $0x688] sm:$0xf]
    %v634 = vld [vmem:[#allocation7 + $0x68c] sm:$0xf]
    %v635 = vld [vmem:[#allocation7 + $0x690] sm:$0xf]
    %v636 = vld [vmem:[#allocation7 + $0x694] sm:$0xf]
    %v637 = vld [vmem:[#allocation7 + $0x698] sm:$0xf]
    %v638 = vld [vmem:[#allocation7 + $0x69c] sm:$0xf]
    %v639 = vld [vmem:[#allocation7 + $0x6a0] sm:$0xf]
    %v640 = vld [vmem:[#allocation7 + $0x6a4] sm:$0xf]
    %v641 = vld [vmem:[#allocation7 + $0x6a8] sm:$0xf]
    %v642 = vld [vmem:[#allocation7 + $0x6ac] sm:$0xf]
    %v643 = vld [vmem:[#allocation7 + $0x6b0] sm:$0xf]
    %v644 = vld [vmem:[#allocation7 + $0x6b4] sm:$0xf]
    %v645 = vld [vmem:[#allocation7 + $0x6b8] sm:$0xf]
    %v646 = vld [vmem:[#allocation7 + $0x6bc] sm:$0xf]
    %v647 = vld [vmem:[#allocation7 + $0x6c0] sm:$0xf]
    %v648 = vld [vmem:[#allocation7 + $0x6c4] sm:$0xf]
    %v649 = vld [vmem:[#allocation7 + $0x6c8] sm:$0xf]
    %v650 = vld [vmem:[#allocation7 + $0x6cc] sm:$0xf]
    %v651 = vld [vmem:[#allocation7 + $0x6d0] sm:$0xf]
    %v652 = vld [vmem:[#allocation7 + $0x6d4] sm:$0xf]
    %v653 = vld [vmem:[#allocation7 + $0x6d8] sm:$0xf]
    %v654 = vld [vmem:[#allocation7 + $0x6dc] sm:$0xf]
    %v655 = vld [vmem:[#allocation7 + $0x6e0] sm:$0xf]
    %v656 = vld [vmem:[#allocation7 + $0x6e4] sm:$0xf]
    %v657 = vld [vmem:[#allocation7 + $0x6e8] sm:$0xf]
    %v658 = vld [vmem:[#allocation7 + $0x6ec] sm:$0xf]
    %v659 = vld [vmem:[#allocation7 + $0x6f0] sm:$0xf]
    %v660 = vld [vmem:[#allocation7 + $0x6f4] sm:$0xf]
    %v661 = vld [vmem:[#allocation7 + $0x6f8] sm:$0xf]
    %v662 = vld [vmem:[#allocation7 + $0x6fc] sm:$0xf]
    %v663 = vld [vmem:[#allocation7 + $0x700] sm:$0xf]
    %v664 = vld [vmem:[#allocation7 + $0x704] sm:$0xf]
    %v665 = vld [vmem:[#allocation7 + $0x708] sm:$0xf]
    %v666 = vld [vmem:[#allocation7 + $0x70c] sm:$0xf]
    %v667 = vld [vmem:[#allocation7 + $0x710] sm:$0xf]
    %v668 = vld [vmem:[#allocation7 + $0x714] sm:$0xf]
    %v669 = vld [vmem:[#allocation7 + $0x718] sm:$0xf]
    %v670 = vld [vmem:[#allocation7 + $0x71c] sm:$0xf]
    %v671 = vld [vmem:[#allocation7 + $0x720] sm:$0xf]
    %v672 = vld [vmem:[#allocation7 + $0x724] sm:$0xf]
    %v673 = vld [vmem:[#allocation7 + $0x728] sm:$0xf]
    %v674 = vld [vmem:[#allocation7 + $0x72c] sm:$0xf]
    %v675 = vld [vmem:[#allocation7 + $0x730] sm:$0xf]
    %v676 = vld [vmem:[#allocation7 + $0x734] sm:$0xf]
    %v677 = vld [vmem:[#allocation7 + $0x738] sm:$0xf]
    %v678 = vld [vmem:[#allocation7 + $0x73c] sm:$0xf]
    %v679 = vld [vmem:[#allocation7 + $0x740] sm:$0xf]
    %v680 = vld [vmem:[#allocation7 + $0x744] sm:$0xf]
    %v681 = vld [vmem:[#allocation7 + $0x748] sm:$0xf]
    %v682 = vld [vmem:[#allocation7 + $0x74c] sm:$0xf]
    %v683 = vld [vmem:[#allocation7 + $0x750] sm:$0xf]
    %v684 = vld [vmem:[#allocation7 + $0x754] sm:$0xf]
    %v685 = vld [vmem:[#allocation7 + $0x758] sm:$0xf]
    %v686 = vld [vmem:[#allocation7 + $0x75c] sm:$0xf]
    %v687 = vld [vmem:[#allocation7 + $0x760] sm:$0xf]
    %v688 = vld [vmem:[#allocation7 + $0x764] sm:$0xf]
    %v689 = vld [vmem:[#allocation7 + $0x768] sm:$0xf]
    %v690 = vld [vmem:[#allocation7 + $0x76c] sm:$0xf]
    %v691 = vld [vmem:[#allocation7 + $0x770] sm:$0xf]
    %v692 = vld [vmem:[#allocation7 + $0x774] sm:$0xf]
    %v693 = vld [vmem:[#allocation7 + $0x778] sm:$0xf]
    %v694 = vld [vmem:[#allocation7 + $0x77c] sm:$0xf]
    %v695 = vld [vmem:[#allocation7 + $0x780] sm:$0xf]
    %v696 = vld [vmem:[#allocation7 + $0x784] sm:$0xf]
    %v697 = vld [vmem:[#allocation7 + $0x788] sm:$0xf]
    %v698 = vld [vmem:[#allocation7 + $0x78c] sm:$0xf]
    %v699 = vld [vmem:[#allocation7 + $0x790] sm:$0xf]
    %v700 = vld [vmem:[#allocation7 + $0x794] sm:$0xf]
    %v701 = vld [vmem:[#allocation7 + $0x798] sm:$0xf]
    %v702 = vld [vmem:[#allocation7 + $0x79c] sm:$0xf]
    %v703 = vld [vmem:[#allocation7 + $0x7a0] sm:$0xf]
    %v704 = vld [vmem:[#allocation7 + $0x7a4] sm:$0xf]
    %v705 = vld [vmem:[#allocation7 + $0x7a8] sm:$0xf]
    %v706 = vld [vmem:[#allocation7 + $0x7ac] sm:$0xf]
    %v707 = vld [vmem:[#allocation7 + $0x7b0] sm:$0xf]
    %v708 = vld [vmem:[#allocation7 + $0x7b4] sm:$0xf]
    %v709 = vld [vmem:[#allocation7 + $0x7b8] sm:$0xf]
    %v710 = vld [vmem:[#allocation7 + $0x7bc] sm:$0xf]
    %v711 = vld [vmem:[#allocation7 + $0x7c0] sm:$0xf]
    %v712 = vld [vmem:[#allocation7 + $0x7c4] sm:$0xf]
    %v713 = vld [vmem:[#allocation7 + $0x7c8] sm:$0xf]
    %v714 = vld [vmem:[#allocation7 + $0x7cc] sm:$0xf]
    %v715 = vld [vmem:[#allocation7 + $0x7d0] sm:$0xf]
    %v716 = vld [vmem:[#allocation7 + $0x7d4] sm:$0xf]
    %v717 = vld [vmem:[#allocation7 + $0x7d8] sm:$0xf]
    %v718 = vld [vmem:[#allocation7 + $0x7dc] sm:$0xf]
    %v719 = vld [vmem:[#allocation7 + $0x7e0] sm:$0xf]
    %v720 = vld [vmem:[#allocation7 + $0x7e4] sm:$0xf]
    %v721 = vld [vmem:[#allocation7 + $0x7e8] sm:$0xf]
    %v722 = vld [vmem:[#allocation7 + $0x7ec] sm:$0xf]
    %v723 = vld [vmem:[#allocation7 + $0x7f0] sm:$0xf]
    %v724 = vld [vmem:[#allocation7 + $0x7f4] sm:$0xf]
    %v725 = vld [vmem:[#allocation7 + $0x7f8] sm:$0xf]
    %v726 = vld [vmem:[#allocation7 + $0x7fc] sm:$0xf]
    %v727 = vld [vmem:[%s3] sm:$0x1]
    %v729 = vlaneseq
    %v730 = vshrl.u32 %v729, 7
    %v731 = vsub.s32 0, %v730
    %v732 = vrot.slane %v727, %v731
    %v1246 = vunpack.c.l.b16 %v215
    %v1247 = vunpack.c.l.b16 %v216
    %v1248 = vunpack.c.l.b16 %v217
    %v1249 = vunpack.c.l.b16 %v218
    %v1250 = vunpack.c.l.b16 %v219
    %v1251 = vunpack.c.l.b16 %v220
    %v1252 = vunpack.c.l.b16 %v221
    %v1253 = vunpack.c.l.b16 %v222
    %v1254 = vunpack.c.l.b16 %v223
    %v1255 = vunpack.c.l.b16 %v224
    %v1256 = vunpack.c.l.b16 %v225
    %v1257 = vunpack.c.l.b16 %v226
    %v1258 = vunpack.c.l.b16 %v227
    %v1259 = vunpack.c.l.b16 %v228
    %v1260 = vunpack.c.l.b16 %v229
    %v1261 = vunpack.c.l.b16 %v230
    %v1262 = vunpack.c.l.b16 %v231
    %v1263 = vunpack.c.l.b16 %v232
    %v1264 = vunpack.c.l.b16 %v233
    %v1265 = vunpack.c.l.b16 %v234
    %v1266 = vunpack.c.l.b16 %v235
    %v1267 = vunpack.c.l.b16 %v236
    %v1268 = vunpack.c.l.b16 %v237
    %v1269 = vunpack.c.l.b16 %v238
    %v1270 = vunpack.c.l.b16 %v239
    %v1271 = vunpack.c.l.b16 %v240
    %v1272 = vunpack.c.l.b16 %v241
    %v1273 = vunpack.c.l.b16 %v242
    %v1274 = vunpack.c.l.b16 %v243
    %v1275 = vunpack.c.l.b16 %v244
    %v1276 = vunpack.c.l.b16 %v245
    %v1277 = vunpack.c.l.b16 %v246
    %v1278 = vunpack.c.l.b16 %v247
    %v1279 = vunpack.c.l.b16 %v248
    %v1280 = vunpack.c.l.b16 %v249
    %v1281 = vunpack.c.l.b16 %v250
    %v1282 = vunpack.c.l.b16 %v251
    %v1283 = vunpack.c.l.b16 %v252
    %v1284 = vunpack.c.l.b16 %v253
    %v1285 = vunpack.c.l.b16 %v254
    %v1286 = vunpack.c.l.b16 %v255
    %v1287 = vunpack.c.l.b16 %v256
    %v1288 = vunpack.c.l.b16 %v257
    %v1289 = vunpack.c.l.b16 %v258
    %v1290 = vunpack.c.l.b16 %v259
    %v1291 = vunpack.c.l.b16 %v260
    %v1292 = vunpack.c.l.b16 %v261
    %v1293 = vunpack.c.l.b16 %v262
    %v1294 = vunpack.c.l.b16 %v263
    %v1295 = vunpack.c.l.b16 %v264
    %v1296 = vunpack.c.l.b16 %v265
    %v1297 = vunpack.c.l.b16 %v266
    %v1298 = vunpack.c.l.b16 %v267
    %v1299 = vunpack.c.l.b16 %v268
    %v1300 = vunpack.c.l.b16 %v269
    %v1301 = vunpack.c.l.b16 %v270
    %v1302 = vunpack.c.l.b16 %v271
    %v1303 = vunpack.c.l.b16 %v272
    %v1304 = vunpack.c.l.b16 %v273
    %v1305 = vunpack.c.l.b16 %v274
    %v1306 = vunpack.c.l.b16 %v275
    %v1307 = vunpack.c.l.b16 %v276
    %v1308 = vunpack.c.l.b16 %v277
    %v1309 = vunpack.c.l.b16 %v278
    %v1310 = vunpack.c.l.b16 %v279
    %v1311 = vunpack.c.l.b16 %v280
    %v1312 = vunpack.c.l.b16 %v281
    %v1313 = vunpack.c.l.b16 %v282
    %v1314 = vunpack.c.l.b16 %v283
    %v1315 = vunpack.c.l.b16 %v284
    %v1316 = vunpack.c.l.b16 %v285
    %v1317 = vunpack.c.l.b16 %v286
    %v1318 = vunpack.c.l.b16 %v287
    %v1319 = vunpack.c.l.b16 %v288
    %v1320 = vunpack.c.l.b16 %v289
    %v1321 = vunpack.c.l.b16 %v290
    %v1322 = vunpack.c.l.b16 %v291
    %v1323 = vunpack.c.l.b16 %v292
    %v1324 = vunpack.c.l.b16 %v293
    %v1325 = vunpack.c.l.b16 %v294
    %v1326 = vunpack.c.l.b16 %v295
    %v1327 = vunpack.c.l.b16 %v296
    %v1328 = vunpack.c.l.b16 %v297
    %v1329 = vunpack.c.l.b16 %v298
    %v1330 = vunpack.c.l.b16 %v299
    %v1331 = vunpack.c.l.b16 %v300
    %v1332 = vunpack.c.l.b16 %v301
    %v1333 = vunpack.c.l.b16 %v302
    %v1334 = vunpack.c.l.b16 %v303
    %v1335 = vunpack.c.l.b16 %v304
    %v1336 = vunpack.c.l.b16 %v305
    %v1337 = vunpack.c.l.b16 %v306
    %v1338 = vunpack.c.l.b16 %v307
    %v1339 = vunpack.c.l.b16 %v308
    %v1340 = vunpack.c.l.b16 %v309
    %v1341 = vunpack.c.l.b16 %v310
    %v1342 = vunpack.c.l.b16 %v311
    %v1343 = vunpack.c.l.b16 %v312
    %v1344 = vunpack.c.l.b16 %v313
    %v1345 = vunpack.c.l.b16 %v314
    %v1346 = vunpack.c.l.b16 %v315
    %v1347 = vunpack.c.l.b16 %v316
    %v1348 = vunpack.c.l.b16 %v317
    %v1349 = vunpack.c.l.b16 %v318
    %v1350 = vunpack.c.l.b16 %v319
    %v1351 = vunpack.c.l.b16 %v320
    %v1352 = vunpack.c.l.b16 %v321
    %v1353 = vunpack.c.l.b16 %v322
    %v1354 = vunpack.c.l.b16 %v323
    %v1355 = vunpack.c.l.b16 %v324
    %v1356 = vunpack.c.l.b16 %v325
    %v1357 = vunpack.c.l.b16 %v326
    %v1358 = vunpack.c.l.b16 %v327
    %v1359 = vunpack.c.l.b16 %v328
    %v1360 = vunpack.c.l.b16 %v329
    %v1361 = vunpack.c.l.b16 %v330
    %v1362 = vunpack.c.l.b16 %v331
    %v1363 = vunpack.c.l.b16 %v332
    %v1364 = vunpack.c.l.b16 %v333
    %v1365 = vunpack.c.l.b16 %v334
    %v1366 = vunpack.c.l.b16 %v335
    %v1367 = vunpack.c.l.b16 %v336
    %v1368 = vunpack.c.l.b16 %v337
    %v1369 = vunpack.c.l.b16 %v338
    %v1370 = vunpack.c.l.b16 %v339
    %v1371 = vunpack.c.l.b16 %v340
    %v1372 = vunpack.c.l.b16 %v341
    %v1373 = vunpack.c.l.b16 %v342
    %v1374 = vunpack.c.l.b16 %v343
    %v1375 = vunpack.c.l.b16 %v344
    %v1376 = vunpack.c.l.b16 %v345
    %v1377 = vunpack.c.l.b16 %v346
    %v1378 = vunpack.c.l.b16 %v347
    %v1379 = vunpack.c.l.b16 %v348
    %v1380 = vunpack.c.l.b16 %v349
    %v1381 = vunpack.c.l.b16 %v350
    %v1382 = vunpack.c.l.b16 %v351
    %v1383 = vunpack.c.l.b16 %v352
    %v1384 = vunpack.c.l.b16 %v353
    %v1385 = vunpack.c.l.b16 %v354
    %v1386 = vunpack.c.l.b16 %v355
    %v1387 = vunpack.c.l.b16 %v356
    %v1388 = vunpack.c.l.b16 %v357
    %v1389 = vunpack.c.l.b16 %v358
    %v1390 = vunpack.c.l.b16 %v359
    %v1391 = vunpack.c.l.b16 %v360
    %v1392 = vunpack.c.l.b16 %v361
    %v1393 = vunpack.c.l.b16 %v362
    %v1394 = vunpack.c.l.b16 %v363
    %v1395 = vunpack.c.l.b16 %v364
    %v1396 = vunpack.c.l.b16 %v365
    %v1397 = vunpack.c.l.b16 %v366
    %v1398 = vunpack.c.l.b16 %v367
    %v1399 = vunpack.c.l.b16 %v368
    %v1400 = vunpack.c.l.b16 %v369
    %v1401 = vunpack.c.l.b16 %v370
    %v1402 = vunpack.c.l.b16 %v371
    %v1403 = vunpack.c.l.b16 %v372
    %v1404 = vunpack.c.l.b16 %v373
    %v1405 = vunpack.c.l.b16 %v374
    %v1406 = vunpack.c.l.b16 %v375
    %v1407 = vunpack.c.l.b16 %v376
    %v1408 = vunpack.c.l.b16 %v377
    %v1409 = vunpack.c.l.b16 %v378
    %v1410 = vunpack.c.l.b16 %v379
    %v1411 = vunpack.c.l.b16 %v380
    %v1412 = vunpack.c.l.b16 %v381
    %v1413 = vunpack.c.l.b16 %v382
    %v1414 = vunpack.c.l.b16 %v383
    %v1415 = vunpack.c.l.b16 %v384
    %v1416 = vunpack.c.l.b16 %v385
    %v1417 = vunpack.c.l.b16 %v386
    %v1418 = vunpack.c.l.b16 %v387
    %v1419 = vunpack.c.l.b16 %v388
    %v1420 = vunpack.c.l.b16 %v389
    %v1421 = vunpack.c.l.b16 %v390
    %v1422 = vunpack.c.l.b16 %v391
    %v1423 = vunpack.c.l.b16 %v392
    %v1424 = vunpack.c.l.b16 %v393
    %v1425 = vunpack.c.l.b16 %v394
    %v1426 = vunpack.c.l.b16 %v395
    %v1427 = vunpack.c.l.b16 %v396
    %v1428 = vunpack.c.l.b16 %v397
    %v1429 = vunpack.c.l.b16 %v398
    %v1430 = vunpack.c.l.b16 %v399
    %v1431 = vunpack.c.l.b16 %v400
    %v1432 = vunpack.c.l.b16 %v401
    %v1433 = vunpack.c.l.b16 %v402
    %v1434 = vunpack.c.l.b16 %v403
    %v1435 = vunpack.c.l.b16 %v404
    %v1436 = vunpack.c.l.b16 %v405
    %v1437 = vunpack.c.l.b16 %v406
    %v1438 = vunpack.c.l.b16 %v407
    %v1439 = vunpack.c.l.b16 %v408
    %v1440 = vunpack.c.l.b16 %v409
    %v1441 = vunpack.c.l.b16 %v410
    %v1442 = vunpack.c.l.b16 %v411
    %v1443 = vunpack.c.l.b16 %v412
    %v1444 = vunpack.c.l.b16 %v413
    %v1445 = vunpack.c.l.b16 %v414
    %v1446 = vunpack.c.l.b16 %v415
    %v1447 = vunpack.c.l.b16 %v416
    %v1448 = vunpack.c.l.b16 %v417
    %v1449 = vunpack.c.l.b16 %v418
    %v1450 = vunpack.c.l.b16 %v419
    %v1451 = vunpack.c.l.b16 %v420
    %v1452 = vunpack.c.l.b16 %v421
    %v1453 = vunpack.c.l.b16 %v422
    %v1454 = vunpack.c.l.b16 %v423
    %v1455 = vunpack.c.l.b16 %v424
    %v1456 = vunpack.c.l.b16 %v425
    %v1457 = vunpack.c.l.b16 %v426
    %v1458 = vunpack.c.l.b16 %v427
    %v1459 = vunpack.c.l.b16 %v428
    %v1460 = vunpack.c.l.b16 %v429
    %v1461 = vunpack.c.l.b16 %v430
    %v1462 = vunpack.c.l.b16 %v431
    %v1463 = vunpack.c.l.b16 %v432
    %v1464 = vunpack.c.l.b16 %v433
    %v1465 = vunpack.c.l.b16 %v434
    %v1466 = vunpack.c.l.b16 %v435
    %v1467 = vunpack.c.l.b16 %v436
    %v1468 = vunpack.c.l.b16 %v437
    %v1469 = vunpack.c.l.b16 %v438
    %v1470 = vunpack.c.l.b16 %v439
    %v1471 = vunpack.c.l.b16 %v440
    %v1472 = vunpack.c.l.b16 %v441
    %v1473 = vunpack.c.l.b16 %v442
    %v1474 = vunpack.c.l.b16 %v443
    %v1475 = vunpack.c.l.b16 %v444
    %v1476 = vunpack.c.l.b16 %v445
    %v1477 = vunpack.c.l.b16 %v446
    %v1478 = vunpack.c.l.b16 %v447
    %v1479 = vunpack.c.l.b16 %v448
    %v1480 = vunpack.c.l.b16 %v449
    %v1481 = vunpack.c.l.b16 %v450
    %v1482 = vunpack.c.l.b16 %v451
    %v1483 = vunpack.c.l.b16 %v452
    %v1484 = vunpack.c.l.b16 %v453
    %v1485 = vunpack.c.l.b16 %v454
    %v1486 = vunpack.c.l.b16 %v455
    %v1487 = vunpack.c.l.b16 %v456
    %v1488 = vunpack.c.l.b16 %v457
    %v1489 = vunpack.c.l.b16 %v458
    %v1490 = vunpack.c.l.b16 %v459
    %v1491 = vunpack.c.l.b16 %v460
    %v1492 = vunpack.c.l.b16 %v461
    %v1493 = vunpack.c.l.b16 %v462
    %v1494 = vunpack.c.l.b16 %v463
    %v1495 = vunpack.c.l.b16 %v464
    %v1496 = vunpack.c.l.b16 %v465
    %v1497 = vunpack.c.l.b16 %v466
    %v1498 = vunpack.c.l.b16 %v467
    %v1499 = vunpack.c.l.b16 %v468
    %v1500 = vunpack.c.l.b16 %v469
    %v1501 = vunpack.c.l.b16 %v470
    %v1502 = vunpack.c.l.b16 %v471
    %v1503 = vunpack.c.l.b16 %v472
    %v1504 = vunpack.c.l.b16 %v473
    %v1505 = vunpack.c.l.b16 %v474
    %v1506 = vunpack.c.l.b16 %v475
    %v1507 = vunpack.c.l.b16 %v476
    %v1508 = vunpack.c.l.b16 %v477
    %v1509 = vunpack.c.l.b16 %v478
    %v1510 = vunpack.c.l.b16 %v479
    %v1511 = vunpack.c.l.b16 %v480
    %v1512 = vunpack.c.l.b16 %v481
    %v1513 = vunpack.c.l.b16 %v482
    %v1514 = vunpack.c.l.b16 %v483
    %v1515 = vunpack.c.l.b16 %v484
    %v1516 = vunpack.c.l.b16 %v485
    %v1517 = vunpack.c.l.b16 %v486
    %v1518 = vunpack.c.l.b16 %v487
    %v1519 = vunpack.c.l.b16 %v488
    %v1520 = vunpack.c.l.b16 %v489
    %v1521 = vunpack.c.l.b16 %v490
    %v1522 = vunpack.c.l.b16 %v491
    %v1523 = vunpack.c.l.b16 %v492
    %v1524 = vunpack.c.l.b16 %v493
    %v1525 = vunpack.c.l.b16 %v494
    %v1526 = vunpack.c.l.b16 %v495
    %v1527 = vunpack.c.l.b16 %v496
    %v1528 = vunpack.c.l.b16 %v497
    %v1529 = vunpack.c.l.b16 %v498
    %v1530 = vunpack.c.l.b16 %v499
    %v1531 = vunpack.c.l.b16 %v500
    %v1532 = vunpack.c.l.b16 %v501
    %v1533 = vunpack.c.l.b16 %v502
    %v1534 = vunpack.c.l.b16 %v503
    %v1535 = vunpack.c.l.b16 %v504
    %v1536 = vunpack.c.l.b16 %v505
    %v1537 = vunpack.c.l.b16 %v506
    %v1538 = vunpack.c.l.b16 %v507
    %v1539 = vunpack.c.l.b16 %v508
    %v1540 = vunpack.c.l.b16 %v509
    %v1541 = vunpack.c.l.b16 %v510
    %v1542 = vunpack.c.l.b16 %v511
    %v1543 = vunpack.c.l.b16 %v512
    %v1544 = vunpack.c.l.b16 %v513
    %v1545 = vunpack.c.l.b16 %v514
    %v1546 = vunpack.c.l.b16 %v515
    %v1547 = vunpack.c.l.b16 %v516
    %v1548 = vunpack.c.l.b16 %v517
    %v1549 = vunpack.c.l.b16 %v518
    %v1550 = vunpack.c.l.b16 %v519
    %v1551 = vunpack.c.l.b16 %v520
    %v1552 = vunpack.c.l.b16 %v521
    %v1553 = vunpack.c.l.b16 %v522
    %v1554 = vunpack.c.l.b16 %v523
    %v1555 = vunpack.c.l.b16 %v524
    %v1556 = vunpack.c.l.b16 %v525
    %v1557 = vunpack.c.l.b16 %v526
    %v1558 = vunpack.c.l.b16 %v527
    %v1559 = vunpack.c.l.b16 %v528
    %v1560 = vunpack.c.l.b16 %v529
    %v1561 = vunpack.c.l.b16 %v530
    %v1562 = vunpack.c.l.b16 %v531
    %v1563 = vunpack.c.l.b16 %v532
    %v1564 = vunpack.c.l.b16 %v533
    %v1565 = vunpack.c.l.b16 %v534
    %v1566 = vunpack.c.l.b16 %v535
    %v1567 = vunpack.c.l.b16 %v536
    %v1568 = vunpack.c.l.b16 %v537
    %v1569 = vunpack.c.l.b16 %v538
    %v1570 = vunpack.c.l.b16 %v539
    %v1571 = vunpack.c.l.b16 %v540
    %v1572 = vunpack.c.l.b16 %v541
    %v1573 = vunpack.c.l.b16 %v542
    %v1574 = vunpack.c.l.b16 %v543
    %v1575 = vunpack.c.l.b16 %v544
    %v1576 = vunpack.c.l.b16 %v545
    %v1577 = vunpack.c.l.b16 %v546
    %v1578 = vunpack.c.l.b16 %v547
    %v1579 = vunpack.c.l.b16 %v548
    %v1580 = vunpack.c.l.b16 %v549
    %v1581 = vunpack.c.l.b16 %v550
    %v1582 = vunpack.c.l.b16 %v551
    %v1583 = vunpack.c.l.b16 %v552
    %v1584 = vunpack.c.l.b16 %v553
    %v1585 = vunpack.c.l.b16 %v554
    %v1586 = vunpack.c.l.b16 %v555
    %v1587 = vunpack.c.l.b16 %v556
    %v1588 = vunpack.c.l.b16 %v557
    %v1589 = vunpack.c.l.b16 %v558
    %v1590 = vunpack.c.l.b16 %v559
    %v1591 = vunpack.c.l.b16 %v560
    %v1592 = vunpack.c.l.b16 %v561
    %v1593 = vunpack.c.l.b16 %v562
    %v1594 = vunpack.c.l.b16 %v563
    %v1595 = vunpack.c.l.b16 %v564
    %v1596 = vunpack.c.l.b16 %v565
    %v1597 = vunpack.c.l.b16 %v566
    %v1598 = vunpack.c.l.b16 %v567
    %v1599 = vunpack.c.l.b16 %v568
    %v1600 = vunpack.c.l.b16 %v569
    %v1601 = vunpack.c.l.b16 %v570
    %v1602 = vunpack.c.l.b16 %v571
    %v1603 = vunpack.c.l.b16 %v572
    %v1604 = vunpack.c.l.b16 %v573
    %v1605 = vunpack.c.l.b16 %v574
    %v1606 = vunpack.c.l.b16 %v575
    %v1607 = vunpack.c.l.b16 %v576
    %v1608 = vunpack.c.l.b16 %v577
    %v1609 = vunpack.c.l.b16 %v578
    %v1610 = vunpack.c.l.b16 %v579
    %v1611 = vunpack.c.l.b16 %v580
    %v1612 = vunpack.c.l.b16 %v581
    %v1613 = vunpack.c.l.b16 %v582
    %v1614 = vunpack.c.l.b16 %v583
    %v1615 = vunpack.c.l.b16 %v584
    %v1616 = vunpack.c.l.b16 %v585
    %v1617 = vunpack.c.l.b16 %v586
    %v1618 = vunpack.c.l.b16 %v587
    %v1619 = vunpack.c.l.b16 %v588
    %v1620 = vunpack.c.l.b16 %v589
    %v1621 = vunpack.c.l.b16 %v590
    %v1622 = vunpack.c.l.b16 %v591
    %v1623 = vunpack.c.l.b16 %v592
    %v1624 = vunpack.c.l.b16 %v593
    %v1625 = vunpack.c.l.b16 %v594
    %v1626 = vunpack.c.l.b16 %v595
    %v1627 = vunpack.c.l.b16 %v596
    %v1628 = vunpack.c.l.b16 %v597
    %v1629 = vunpack.c.l.b16 %v598
    %v1630 = vunpack.c.l.b16 %v599
    %v1631 = vunpack.c.l.b16 %v600
    %v1632 = vunpack.c.l.b16 %v601
    %v1633 = vunpack.c.l.b16 %v602
    %v1634 = vunpack.c.l.b16 %v603
    %v1635 = vunpack.c.l.b16 %v604
    %v1636 = vunpack.c.l.b16 %v605
    %v1637 = vunpack.c.l.b16 %v606
    %v1638 = vunpack.c.l.b16 %v607
    %v1639 = vunpack.c.l.b16 %v608
    %v1640 = vunpack.c.l.b16 %v609
    %v1641 = vunpack.c.l.b16 %v610
    %v1642 = vunpack.c.l.b16 %v611
    %v1643 = vunpack.c.l.b16 %v612
    %v1644 = vunpack.c.l.b16 %v613
    %v1645 = vunpack.c.l.b16 %v614
    %v1646 = vunpack.c.l.b16 %v615
    %v1647 = vunpack.c.l.b16 %v616
    %v1648 = vunpack.c.l.b16 %v617
    %v1649 = vunpack.c.l.b16 %v618
    %v1650 = vunpack.c.l.b16 %v619
    %v1651 = vunpack.c.l.b16 %v620
    %v1652 = vunpack.c.l.b16 %v621
    %v1653 = vunpack.c.l.b16 %v622
    %v1654 = vunpack.c.l.b16 %v623
    %v1655 = vunpack.c.l.b16 %v624
    %v1656 = vunpack.c.l.b16 %v625
    %v1657 = vunpack.c.l.b16 %v626
    %v1658 = vunpack.c.l.b16 %v627
    %v1659 = vunpack.c.l.b16 %v628
    %v1660 = vunpack.c.l.b16 %v629
    %v1661 = vunpack.c.l.b16 %v630
    %v1662 = vunpack.c.l.b16 %v631
    %v1663 = vunpack.c.l.b16 %v632
    %v1664 = vunpack.c.l.b16 %v633
    %v1665 = vunpack.c.l.b16 %v634
    %v1666 = vunpack.c.l.b16 %v635
    %v1667 = vunpack.c.l.b16 %v636
    %v1668 = vunpack.c.l.b16 %v637
    %v1669 = vunpack.c.l.b16 %v638
    %v1670 = vunpack.c.l.b16 %v639
    %v1671 = vunpack.c.l.b16 %v640
    %v1672 = vunpack.c.l.b16 %v641
    %v1673 = vunpack.c.l.b16 %v642
    %v1674 = vunpack.c.l.b16 %v643
    %v1675 = vunpack.c.l.b16 %v644
    %v1676 = vunpack.c.l.b16 %v645
    %v1677 = vunpack.c.l.b16 %v646
    %v1678 = vunpack.c.l.b16 %v647
    %v1679 = vunpack.c.l.b16 %v648
    %v1680 = vunpack.c.l.b16 %v649
    %v1681 = vunpack.c.l.b16 %v650
    %v1682 = vunpack.c.l.b16 %v651
    %v1683 = vunpack.c.l.b16 %v652
    %v1684 = vunpack.c.l.b16 %v653
    %v1685 = vunpack.c.l.b16 %v654
    %v1686 = vunpack.c.l.b16 %v655
    %v1687 = vunpack.c.l.b16 %v656
    %v1688 = vunpack.c.l.b16 %v657
    %v1689 = vunpack.c.l.b16 %v658
    %v1690 = vunpack.c.l.b16 %v659
    %v1691 = vunpack.c.l.b16 %v660
    %v1692 = vunpack.c.l.b16 %v661
    %v1693 = vunpack.c.l.b16 %v662
    %v1694 = vunpack.c.l.b16 %v663
    %v1695 = vunpack.c.l.b16 %v664
    %v1696 = vunpack.c.l.b16 %v665
    %v1697 = vunpack.c.l.b16 %v666
    %v1698 = vunpack.c.l.b16 %v667
    %v1699 = vunpack.c.l.b16 %v668
    %v1700 = vunpack.c.l.b16 %v669
    %v1701 = vunpack.c.l.b16 %v670
    %v1702 = vunpack.c.l.b16 %v671
    %v1703 = vunpack.c.l.b16 %v672
    %v1704 = vunpack.c.l.b16 %v673
    %v1705 = vunpack.c.l.b16 %v674
    %v1706 = vunpack.c.l.b16 %v675
    %v1707 = vunpack.c.l.b16 %v676
    %v1708 = vunpack.c.l.b16 %v677
    %v1709 = vunpack.c.l.b16 %v678
    %v1710 = vunpack.c.l.b16 %v679
    %v1711 = vunpack.c.l.b16 %v680
    %v1712 = vunpack.c.l.b16 %v681
    %v1713 = vunpack.c.l.b16 %v682
    %v1714 = vunpack.c.l.b16 %v683
    %v1715 = vunpack.c.l.b16 %v684
    %v1716 = vunpack.c.l.b16 %v685
    %v1717 = vunpack.c.l.b16 %v686
    %v1718 = vunpack.c.l.b16 %v687
    %v1719 = vunpack.c.l.b16 %v688
    %v1720 = vunpack.c.l.b16 %v689
    %v1721 = vunpack.c.l.b16 %v690
    %v1722 = vunpack.c.l.b16 %v691
    %v1723 = vunpack.c.l.b16 %v692
    %v1724 = vunpack.c.l.b16 %v693
    %v1725 = vunpack.c.l.b16 %v694
    %v1726 = vunpack.c.l.b16 %v695
    %v1727 = vunpack.c.l.b16 %v696
    %v1728 = vunpack.c.l.b16 %v697
    %v1729 = vunpack.c.l.b16 %v698
    %v1730 = vunpack.c.l.b16 %v699
    %v1731 = vunpack.c.l.b16 %v700
    %v1732 = vunpack.c.l.b16 %v701
    %v1733 = vunpack.c.l.b16 %v702
    %v1734 = vunpack.c.l.b16 %v703
    %v1735 = vunpack.c.l.b16 %v704
    %v1736 = vunpack.c.l.b16 %v705
    %v1737 = vunpack.c.l.b16 %v706
    %v1738 = vunpack.c.l.b16 %v707
    %v1739 = vunpack.c.l.b16 %v708
    %v1740 = vunpack.c.l.b16 %v709
    %v1741 = vunpack.c.l.b16 %v710
    %v1742 = vunpack.c.l.b16 %v711
    %v1743 = vunpack.c.l.b16 %v712
    %v1744 = vunpack.c.l.b16 %v713
    %v1745 = vunpack.c.l.b16 %v714
    %v1746 = vunpack.c.l.b16 %v715
    %v1747 = vunpack.c.l.b16 %v716
    %v1748 = vunpack.c.l.b16 %v717
    %v1749 = vunpack.c.l.b16 %v718
    %v1750 = vunpack.c.l.b16 %v719
    %v1751 = vunpack.c.l.b16 %v720
    %v1752 = vunpack.c.l.b16 %v721
    %v1753 = vunpack.c.l.b16 %v722
    %v1754 = vunpack.c.l.b16 %v723
    %v1755 = vunpack.c.l.b16 %v724
    %v1756 = vunpack.c.l.b16 %v725
    %v1757 = vunpack.c.l.b16 %v726
    %v1758 = vpack.c.b16 %v1247, %v1246
    %v1759 = vpack.c.b16 %v1249, %v1248
    %v1760 = vpack.c.b16 %v1251, %v1250
    %v1761 = vpack.c.b16 %v1253, %v1252
    %v1762 = vpack.c.b16 %v1255, %v1254
    %v1763 = vpack.c.b16 %v1257, %v1256
    %v1764 = vpack.c.b16 %v1259, %v1258
    %v1765 = vpack.c.b16 %v1261, %v1260
    %v1766 = vpack.c.b16 %v1263, %v1262
    %v1767 = vpack.c.b16 %v1265, %v1264
    %v1768 = vpack.c.b16 %v1267, %v1266
    %v1769 = vpack.c.b16 %v1269, %v1268
    %v1770 = vpack.c.b16 %v1271, %v1270
    %v1771 = vpack.c.b16 %v1273, %v1272
    %v1772 = vpack.c.b16 %v1275, %v1274
    %v1773 = vpack.c.b16 %v1277, %v1276
    %v1774 = vpack.c.b16 %v1279, %v1278
    %v1775 = vpack.c.b16 %v1281, %v1280
    %v1776 = vpack.c.b16 %v1283, %v1282
    %v1777 = vpack.c.b16 %v1285, %v1284
    %v1778 = vpack.c.b16 %v1287, %v1286
    %v1779 = vpack.c.b16 %v1289, %v1288
    %v1780 = vpack.c.b16 %v1291, %v1290
    %v1781 = vpack.c.b16 %v1293, %v1292
    %v1782 = vpack.c.b16 %v1295, %v1294
    %v1783 = vpack.c.b16 %v1297, %v1296
    %v1784 = vpack.c.b16 %v1299, %v1298
    %v1785 = vpack.c.b16 %v1301, %v1300
    %v1786 = vpack.c.b16 %v1303, %v1302
    %v1787 = vpack.c.b16 %v1305, %v1304
    %v1788 = vpack.c.b16 %v1307, %v1306
    %v1789 = vpack.c.b16 %v1309, %v1308
    %v1790 = vpack.c.b16 %v1311, %v1310
    %v1791 = vpack.c.b16 %v1313, %v1312
    %v1792 = vpack.c.b16 %v1315, %v1314
    %v1793 = vpack.c.b16 %v1317, %v1316
    %v1794 = vpack.c.b16 %v1319, %v1318
    %v1795 = vpack.c.b16 %v1321, %v1320
    %v1796 = vpack.c.b16 %v1323, %v1322
    %v1797 = vpack.c.b16 %v1325, %v1324
    %v1798 = vpack.c.b16 %v1327, %v1326
    %v1799 = vpack.c.b16 %v1329, %v1328
    %v1800 = vpack.c.b16 %v1331, %v1330
    %v1801 = vpack.c.b16 %v1333, %v1332
    %v1802 = vpack.c.b16 %v1335, %v1334
    %v1803 = vpack.c.b16 %v1337, %v1336
    %v1804 = vpack.c.b16 %v1339, %v1338
    %v1805 = vpack.c.b16 %v1341, %v1340
    %v1806 = vpack.c.b16 %v1343, %v1342
    %v1807 = vpack.c.b16 %v1345, %v1344
    %v1808 = vpack.c.b16 %v1347, %v1346
    %v1809 = vpack.c.b16 %v1349, %v1348
    %v1810 = vpack.c.b16 %v1351, %v1350
    %v1811 = vpack.c.b16 %v1353, %v1352
    %v1812 = vpack.c.b16 %v1355, %v1354
    %v1813 = vpack.c.b16 %v1357, %v1356
    %v1814 = vpack.c.b16 %v1359, %v1358
    %v1815 = vpack.c.b16 %v1361, %v1360
    %v1816 = vpack.c.b16 %v1363, %v1362
    %v1817 = vpack.c.b16 %v1365, %v1364
    %v1818 = vpack.c.b16 %v1367, %v1366
    %v1819 = vpack.c.b16 %v1369, %v1368
    %v1820 = vpack.c.b16 %v1371, %v1370
    %v1821 = vpack.c.b16 %v1373, %v1372
    %v1822 = vpack.c.b16 %v1375, %v1374
    %v1823 = vpack.c.b16 %v1377, %v1376
    %v1824 = vpack.c.b16 %v1379, %v1378
    %v1825 = vpack.c.b16 %v1381, %v1380
    %v1826 = vpack.c.b16 %v1383, %v1382
    %v1827 = vpack.c.b16 %v1385, %v1384
    %v1828 = vpack.c.b16 %v1387, %v1386
    %v1829 = vpack.c.b16 %v1389, %v1388
    %v1830 = vpack.c.b16 %v1391, %v1390
    %v1831 = vpack.c.b16 %v1393, %v1392
    %v1832 = vpack.c.b16 %v1395, %v1394
    %v1833 = vpack.c.b16 %v1397, %v1396
    %v1834 = vpack.c.b16 %v1399, %v1398
    %v1835 = vpack.c.b16 %v1401, %v1400
    %v1836 = vpack.c.b16 %v1403, %v1402
    %v1837 = vpack.c.b16 %v1405, %v1404
    %v1838 = vpack.c.b16 %v1407, %v1406
    %v1839 = vpack.c.b16 %v1409, %v1408
    %v1840 = vpack.c.b16 %v1411, %v1410
    %v1841 = vpack.c.b16 %v1413, %v1412
    %v1842 = vpack.c.b16 %v1415, %v1414
    %v1843 = vpack.c.b16 %v1417, %v1416
    %v1844 = vpack.c.b16 %v1419, %v1418
    %v1845 = vpack.c.b16 %v1421, %v1420
    %v1846 = vpack.c.b16 %v1423, %v1422
    %v1847 = vpack.c.b16 %v1425, %v1424
    %v1848 = vpack.c.b16 %v1427, %v1426
    %v1849 = vpack.c.b16 %v1429, %v1428
    %v1850 = vpack.c.b16 %v1431, %v1430
    %v1851 = vpack.c.b16 %v1433, %v1432
    %v1852 = vpack.c.b16 %v1435, %v1434
    %v1853 = vpack.c.b16 %v1437, %v1436
    %v1854 = vpack.c.b16 %v1439, %v1438
    %v1855 = vpack.c.b16 %v1441, %v1440
    %v1856 = vpack.c.b16 %v1443, %v1442
    %v1857 = vpack.c.b16 %v1445, %v1444
    %v1858 = vpack.c.b16 %v1447, %v1446
    %v1859 = vpack.c.b16 %v1449, %v1448
    %v1860 = vpack.c.b16 %v1451, %v1450
    %v1861 = vpack.c.b16 %v1453, %v1452
    %v1862 = vpack.c.b16 %v1455, %v1454
    %v1863 = vpack.c.b16 %v1457, %v1456
    %v1864 = vpack.c.b16 %v1459, %v1458
    %v1865 = vpack.c.b16 %v1461, %v1460
    %v1866 = vpack.c.b16 %v1463, %v1462
    %v1867 = vpack.c.b16 %v1465, %v1464
    %v1868 = vpack.c.b16 %v1467, %v1466
    %v1869 = vpack.c.b16 %v1469, %v1468
    %v1870 = vpack.c.b16 %v1471, %v1470
    %v1871 = vpack.c.b16 %v1473, %v1472
    %v1872 = vpack.c.b16 %v1475, %v1474
    %v1873 = vpack.c.b16 %v1477, %v1476
    %v1874 = vpack.c.b16 %v1479, %v1478
    %v1875 = vpack.c.b16 %v1481, %v1480
    %v1876 = vpack.c.b16 %v1483, %v1482
    %v1877 = vpack.c.b16 %v1485, %v1484
    %v1878 = vpack.c.b16 %v1487, %v1486
    %v1879 = vpack.c.b16 %v1489, %v1488
    %v1880 = vpack.c.b16 %v1491, %v1490
    %v1881 = vpack.c.b16 %v1493, %v1492
    %v1882 = vpack.c.b16 %v1495, %v1494
    %v1883 = vpack.c.b16 %v1497, %v1496
    %v1884 = vpack.c.b16 %v1499, %v1498
    %v1885 = vpack.c.b16 %v1501, %v1500
    %v1886 = vpack.c.b16 %v1503, %v1502
    %v1887 = vpack.c.b16 %v1505, %v1504
    %v1888 = vpack.c.b16 %v1507, %v1506
    %v1889 = vpack.c.b16 %v1509, %v1508
    %v1890 = vpack.c.b16 %v1511, %v1510
    %v1891 = vpack.c.b16 %v1513, %v1512
    %v1892 = vpack.c.b16 %v1515, %v1514
    %v1893 = vpack.c.b16 %v1517, %v1516
    %v1894 = vpack.c.b16 %v1519, %v1518
    %v1895 = vpack.c.b16 %v1521, %v1520
    %v1896 = vpack.c.b16 %v1523, %v1522
    %v1897 = vpack.c.b16 %v1525, %v1524
    %v1898 = vpack.c.b16 %v1527, %v1526
    %v1899 = vpack.c.b16 %v1529, %v1528
    %v1900 = vpack.c.b16 %v1531, %v1530
    %v1901 = vpack.c.b16 %v1533, %v1532
    %v1902 = vpack.c.b16 %v1535, %v1534
    %v1903 = vpack.c.b16 %v1537, %v1536
    %v1904 = vpack.c.b16 %v1539, %v1538
    %v1905 = vpack.c.b16 %v1541, %v1540
    %v1906 = vpack.c.b16 %v1543, %v1542
    %v1907 = vpack.c.b16 %v1545, %v1544
    %v1908 = vpack.c.b16 %v1547, %v1546
    %v1909 = vpack.c.b16 %v1549, %v1548
    %v1910 = vpack.c.b16 %v1551, %v1550
    %v1911 = vpack.c.b16 %v1553, %v1552
    %v1912 = vpack.c.b16 %v1555, %v1554
    %v1913 = vpack.c.b16 %v1557, %v1556
    %v1914 = vpack.c.b16 %v1559, %v1558
    %v1915 = vpack.c.b16 %v1561, %v1560
    %v1916 = vpack.c.b16 %v1563, %v1562
    %v1917 = vpack.c.b16 %v1565, %v1564
    %v1918 = vpack.c.b16 %v1567, %v1566
    %v1919 = vpack.c.b16 %v1569, %v1568
    %v1920 = vpack.c.b16 %v1571, %v1570
    %v1921 = vpack.c.b16 %v1573, %v1572
    %v1922 = vpack.c.b16 %v1575, %v1574
    %v1923 = vpack.c.b16 %v1577, %v1576
    %v1924 = vpack.c.b16 %v1579, %v1578
    %v1925 = vpack.c.b16 %v1581, %v1580
    %v1926 = vpack.c.b16 %v1583, %v1582
    %v1927 = vpack.c.b16 %v1585, %v1584
    %v1928 = vpack.c.b16 %v1587, %v1586
    %v1929 = vpack.c.b16 %v1589, %v1588
    %v1930 = vpack.c.b16 %v1591, %v1590
    %v1931 = vpack.c.b16 %v1593, %v1592
    %v1932 = vpack.c.b16 %v1595, %v1594
    %v1933 = vpack.c.b16 %v1597, %v1596
    %v1934 = vpack.c.b16 %v1599, %v1598
    %v1935 = vpack.c.b16 %v1601, %v1600
    %v1936 = vpack.c.b16 %v1603, %v1602
    %v1937 = vpack.c.b16 %v1605, %v1604
    %v1938 = vpack.c.b16 %v1607, %v1606
    %v1939 = vpack.c.b16 %v1609, %v1608
    %v1940 = vpack.c.b16 %v1611, %v1610
    %v1941 = vpack.c.b16 %v1613, %v1612
    %v1942 = vpack.c.b16 %v1615, %v1614
    %v1943 = vpack.c.b16 %v1617, %v1616
    %v1944 = vpack.c.b16 %v1619, %v1618
    %v1945 = vpack.c.b16 %v1621, %v1620
    %v1946 = vpack.c.b16 %v1623, %v1622
    %v1947 = vpack.c.b16 %v1625, %v1624
    %v1948 = vpack.c.b16 %v1627, %v1626
    %v1949 = vpack.c.b16 %v1629, %v1628
    %v1950 = vpack.c.b16 %v1631, %v1630
    %v1951 = vpack.c.b16 %v1633, %v1632
    %v1952 = vpack.c.b16 %v1635, %v1634
    %v1953 = vpack.c.b16 %v1637, %v1636
    %v1954 = vpack.c.b16 %v1639, %v1638
    %v1955 = vpack.c.b16 %v1641, %v1640
    %v1956 = vpack.c.b16 %v1643, %v1642
    %v1957 = vpack.c.b16 %v1645, %v1644
    %v1958 = vpack.c.b16 %v1647, %v1646
    %v1959 = vpack.c.b16 %v1649, %v1648
    %v1960 = vpack.c.b16 %v1651, %v1650
    %v1961 = vpack.c.b16 %v1653, %v1652
    %v1962 = vpack.c.b16 %v1655, %v1654
    %v1963 = vpack.c.b16 %v1657, %v1656
    %v1964 = vpack.c.b16 %v1659, %v1658
    %v1965 = vpack.c.b16 %v1661, %v1660
    %v1966 = vpack.c.b16 %v1663, %v1662
    %v1967 = vpack.c.b16 %v1665, %v1664
    %v1968 = vpack.c.b16 %v1667, %v1666
    %v1969 = vpack.c.b16 %v1669, %v1668
    %v1970 = vpack.c.b16 %v1671, %v1670
    %v1971 = vpack.c.b16 %v1673, %v1672
    %v1972 = vpack.c.b16 %v1675, %v1674
    %v1973 = vpack.c.b16 %v1677, %v1676
    %v1974 = vpack.c.b16 %v1679, %v1678
    %v1975 = vpack.c.b16 %v1681, %v1680
    %v1976 = vpack.c.b16 %v1683, %v1682
    %v1977 = vpack.c.b16 %v1685, %v1684
    %v1978 = vpack.c.b16 %v1687, %v1686
    %v1979 = vpack.c.b16 %v1689, %v1688
    %v1980 = vpack.c.b16 %v1691, %v1690
    %v1981 = vpack.c.b16 %v1693, %v1692
    %v1982 = vpack.c.b16 %v1695, %v1694
    %v1983 = vpack.c.b16 %v1697, %v1696
    %v1984 = vpack.c.b16 %v1699, %v1698
    %v1985 = vpack.c.b16 %v1701, %v1700
    %v1986 = vpack.c.b16 %v1703, %v1702
    %v1987 = vpack.c.b16 %v1705, %v1704
    %v1988 = vpack.c.b16 %v1707, %v1706
    %v1989 = vpack.c.b16 %v1709, %v1708
    %v1990 = vpack.c.b16 %v1711, %v1710
    %v1991 = vpack.c.b16 %v1713, %v1712
    %v1992 = vpack.c.b16 %v1715, %v1714
    %v1993 = vpack.c.b16 %v1717, %v1716
    %v1994 = vpack.c.b16 %v1719, %v1718
    %v1995 = vpack.c.b16 %v1721, %v1720
    %v1996 = vpack.c.b16 %v1723, %v1722
    %v1997 = vpack.c.b16 %v1725, %v1724
    %v1998 = vpack.c.b16 %v1727, %v1726
    %v1999 = vpack.c.b16 %v1729, %v1728
    %v2000 = vpack.c.b16 %v1731, %v1730
    %v2001 = vpack.c.b16 %v1733, %v1732
    %v2002 = vpack.c.b16 %v1735, %v1734
    %v2003 = vpack.c.b16 %v1737, %v1736
    %v2004 = vpack.c.b16 %v1739, %v1738
    %v2005 = vpack.c.b16 %v1741, %v1740
    %v2006 = vpack.c.b16 %v1743, %v1742
    %v2007 = vpack.c.b16 %v1745, %v1744
    %v2008 = vpack.c.b16 %v1747, %v1746
    %v2009 = vpack.c.b16 %v1749, %v1748
    %v2010 = vpack.c.b16 %v1751, %v1750
    %v2011 = vpack.c.b16 %v1753, %v1752
    %v2012 = vpack.c.b16 %v1755, %v1754
    %v2013 = vpack.c.b16 %v1757, %v1756
    %2270 = vmatprep.subr.bf16.mxu0 0
    %2271 = vmatpush1.bf16.msra.mxu0 %v1765
    %2272 = vmatprep.subr.bf16.mxu0 0
    %2273 = vmatpush1.bf16.msra.mxu0 %v1764
    %2274 = vmatprep.subr.bf16.mxu0 0
    %2275 = vmatpush1.bf16.msra.mxu0 %v1763
    %2276 = vmatprep.subr.bf16.mxu0 0
    %2277 = vmatpush1.bf16.msra.mxu0 %v1762
    %2278 = vmatprep.subr.bf16.mxu0 0
    %2279 = vmatpush1.bf16.msra.mxu0 %v1761
    %2280 = vmatprep.subr.bf16.mxu0 0
    %2281 = vmatpush1.bf16.msra.mxu0 %v1760
    %2282 = vmatprep.subr.bf16.mxu0 0
    %2283 = vmatpush1.bf16.msra.mxu0 %v1759
    %2284 = vmatprep.subr.bf16.mxu0 0
    %2285 = vmatpush1.bf16.msra.mxu0 %v1758
    %2286 = vmatprep.subr.bf16.mxu0 0
    %2287 = vmatpush2.bf16.msra.mxu0 %v1773
    %2288 = vmatprep.subr.bf16.mxu0 0
    %2289 = vmatpush2.bf16.msra.mxu0 %v1772
    %2290 = vmatprep.subr.bf16.mxu0 0
    %2291 = vmatpush2.bf16.msra.mxu0 %v1771
    %2292 = vmatprep.subr.bf16.mxu0 0
    %2293 = vmatpush2.bf16.msra.mxu0 %v1770
    %2294 = vmatprep.subr.bf16.mxu0 0
    %2295 = vmatpush2.bf16.msra.mxu0 %v1769
    %2296 = vmatprep.subr.bf16.mxu0 0
    %2297 = vmatpush2.bf16.msra.mxu0 %v1768
    %2298 = vmatprep.subr.bf16.mxu0 0
    %2299 = vmatpush2.bf16.msra.mxu0 %v1767
    %2300 = vmatprep.subr.bf16.mxu0 0
    %2301 = vmatpush2.bf16.msra.mxu0 %v1766
    %2302 = vmatprep.mubr.bf16.mxu0 %v181
    %2303 = vmatmul.mubr.bf16.gmra.mxu0 %v180
    %v2304 = vpop.f32.mrf.mxu0
    %v2305 = vadd.f32 %v732, %v2304
    %v2306 = vpop.f32.mrf.mxu0
    %v2307 = vpop.f32.mrf.mxu0
    %v2308 = vadd.f32 %v732, %v2307
    %v2309 = vpop.f32.mrf.mxu0
    %2310 = vdwg.mxu0
    %2311 = vmatprep.subr.bf16.mxu0 0
    %2312 = vmatpush1.bf16.msra.mxu0 %v1781
    %2313 = vmatprep.subr.bf16.mxu0 0
    %2314 = vmatpush1.bf16.msra.mxu0 %v1780
    %2315 = vmatprep.subr.bf16.mxu0 0
    %2316 = vmatpush1.bf16.msra.mxu0 %v1779
    %2317 = vmatprep.subr.bf16.mxu0 0
    %2318 = vmatpush1.bf16.msra.mxu0 %v1778
    %2319 = vmatprep.subr.bf16.mxu0 0
    %2320 = vmatpush1.bf16.msra.mxu0 %v1777
    %2321 = vmatprep.subr.bf16.mxu0 0
    %2322 = vmatpush1.bf16.msra.mxu0 %v1776
    %2323 = vmatprep.subr.bf16.mxu0 0
    %2324 = vmatpush1.bf16.msra.mxu0 %v1775
    %2325 = vmatprep.subr.bf16.mxu0 0
    %2326 = vmatpush1.bf16.msra.mxu0 %v1774
    %2327 = vmatprep.subr.bf16.mxu0 0
    %2328 = vmatpush2.bf16.msra.mxu0 %v1789
    %2329 = vmatprep.subr.bf16.mxu0 0
    %2330 = vmatpush2.bf16.msra.mxu0 %v1788
    %2331 = vmatprep.subr.bf16.mxu0 0
    %2332 = vmatpush2.bf16.msra.mxu0 %v1787
    %2333 = vmatprep.subr.bf16.mxu0 0
    %2334 = vmatpush2.bf16.msra.mxu0 %v1786
    %2335 = vmatprep.subr.bf16.mxu0 0
    %2336 = vmatpush2.bf16.msra.mxu0 %v1785
    %2337 = vmatprep.subr.bf16.mxu0 0
    %2338 = vmatpush2.bf16.msra.mxu0 %v1784
    %2339 = vmatprep.subr.bf16.mxu0 0
    %2340 = vmatpush2.bf16.msra.mxu0 %v1783
    %2341 = vmatprep.subr.bf16.mxu0 0
    %2342 = vmatpush2.bf16.msra.mxu0 %v1782
    %2343 = vmatprep.mubr.bf16.mxu0 %v183
    %2344 = vmatmul.mubr.bf16.gmra.mxu0 %v182
    %v2345 = vpop.f32.mrf.mxu0
    %v2346 = vadd.f32 %v2305, %v2345
    %v2347 = vpop.f32.mrf.mxu0
    %v2348 = vpop.f32.mrf.mxu0
    %v2349 = vadd.f32 %v2308, %v2348
    %v2350 = vpop.f32.mrf.mxu0
    %2351 = vdwg.mxu0
    %2352 = vmatprep.subr.bf16.mxu0 0
    %2353 = vmatpush1.bf16.msra.mxu0 %v1797
    %2354 = vmatprep.subr.bf16.mxu0 0
    %2355 = vmatpush1.bf16.msra.mxu0 %v1796
    %2356 = vmatprep.subr.bf16.mxu0 0
    %2357 = vmatpush1.bf16.msra.mxu0 %v1795
    %2358 = vmatprep.subr.bf16.mxu0 0
    %2359 = vmatpush1.bf16.msra.mxu0 %v1794
    %2360 = vmatprep.subr.bf16.mxu0 0
    %2361 = vmatpush1.bf16.msra.mxu0 %v1793
    %2362 = vmatprep.subr.bf16.mxu0 0
    %2363 = vmatpush1.bf16.msra.mxu0 %v1792
    %2364 = vmatprep.subr.bf16.mxu0 0
    %2365 = vmatpush1.bf16.msra.mxu0 %v1791
    %2366 = vmatprep.subr.bf16.mxu0 0
    %2367 = vmatpush1.bf16.msra.mxu0 %v1790
    %2368 = vmatprep.subr.bf16.mxu0 0
    %2369 = vmatpush2.bf16.msra.mxu0 %v1805
    %2370 = vmatprep.subr.bf16.mxu0 0
    %2371 = vmatpush2.bf16.msra.mxu0 %v1804
    %2372 = vmatprep.subr.bf16.mxu0 0
    %2373 = vmatpush2.bf16.msra.mxu0 %v1803
    %2374 = vmatprep.subr.bf16.mxu0 0
    %2375 = vmatpush2.bf16.msra.mxu0 %v1802
    %2376 = vmatprep.subr.bf16.mxu0 0
    %2377 = vmatpush2.bf16.msra.mxu0 %v1801
    %2378 = vmatprep.subr.bf16.mxu0 0
    %2379 = vmatpush2.bf16.msra.mxu0 %v1800
    %2380 = vmatprep.subr.bf16.mxu0 0
    %2381 = vmatpush2.bf16.msra.mxu0 %v1799
    %2382 = vmatprep.subr.bf16.mxu0 0
    %2383 = vmatpush2.bf16.msra.mxu0 %v1798
    %2384 = vmatprep.mubr.bf16.mxu0 %v185
    %2385 = vmatmul.mubr.bf16.gmra.mxu0 %v184
    %v2386 = vpop.f32.mrf.mxu0
    %v2387 = vadd.f32 %v2346, %v2386
    %v2388 = vpop.f32.mrf.mxu0
    %v2389 = vpop.f32.mrf.mxu0
    %v2390 = vadd.f32 %v2349, %v2389
    %v2391 = vpop.f32.mrf.mxu0
    %2392 = vdwg.mxu0
    %2393 = vmatprep.subr.bf16.mxu0 0
    %2394 = vmatpush1.bf16.msra.mxu0 %v1813
    %2395 = vmatprep.subr.bf16.mxu0 0
    %2396 = vmatpush1.bf16.msra.mxu0 %v1812
    %2397 = vmatprep.subr.bf16.mxu0 0
    %2398 = vmatpush1.bf16.msra.mxu0 %v1811
    %2399 = vmatprep.subr.bf16.mxu0 0
    %2400 = vmatpush1.bf16.msra.mxu0 %v1810
    %2401 = vmatprep.subr.bf16.mxu0 0
    %2402 = vmatpush1.bf16.msra.mxu0 %v1809
    %2403 = vmatprep.subr.bf16.mxu0 0
    %2404 = vmatpush1.bf16.msra.mxu0 %v1808
    %2405 = vmatprep.subr.bf16.mxu0 0
    %2406 = vmatpush1.bf16.msra.mxu0 %v1807
    %2407 = vmatprep.subr.bf16.mxu0 0
    %2408 = vmatpush1.bf16.msra.mxu0 %v1806
    %2409 = vmatprep.subr.bf16.mxu0 0
    %2410 = vmatpush2.bf16.msra.mxu0 %v1821
    %2411 = vmatprep.subr.bf16.mxu0 0
    %2412 = vmatpush2.bf16.msra.mxu0 %v1820
    %2413 = vmatprep.subr.bf16.mxu0 0
    %2414 = vmatpush2.bf16.msra.mxu0 %v1819
    %2415 = vmatprep.subr.bf16.mxu0 0
    %2416 = vmatpush2.bf16.msra.mxu0 %v1818
    %2417 = vmatprep.subr.bf16.mxu0 0
    %2418 = vmatpush2.bf16.msra.mxu0 %v1817
    %2419 = vmatprep.subr.bf16.mxu0 0
    %2420 = vmatpush2.bf16.msra.mxu0 %v1816
    %2421 = vmatprep.subr.bf16.mxu0 0
    %2422 = vmatpush2.bf16.msra.mxu0 %v1815
    %2423 = vmatprep.subr.bf16.mxu0 0
    %2424 = vmatpush2.bf16.msra.mxu0 %v1814
    %2425 = vmatprep.mubr.bf16.mxu0 %v187
    %2426 = vmatmul.mubr.bf16.gmra.mxu0 %v186
    %v2427 = vpop.f32.mrf.mxu0
    %v2428 = vadd.f32 %v2387, %v2427
    %v2429 = vpop.f32.mrf.mxu0
    %v2430 = vpop.f32.mrf.mxu0
    %v2431 = vadd.f32 %v2390, %v2430
    %v2432 = vpop.f32.mrf.mxu0
    %2433 = vdwg.mxu0
    %2434 = vmatprep.subr.bf16.mxu0 0
    %2435 = vmatpush1.bf16.msra.mxu0 %v1829
    %2436 = vmatprep.subr.bf16.mxu0 0
    %2437 = vmatpush1.bf16.msra.mxu0 %v1828
    %2438 = vmatprep.subr.bf16.mxu0 0
    %2439 = vmatpush1.bf16.msra.mxu0 %v1827
    %2440 = vmatprep.subr.bf16.mxu0 0
    %2441 = vmatpush1.bf16.msra.mxu0 %v1826
    %2442 = vmatprep.subr.bf16.mxu0 0
    %2443 = vmatpush1.bf16.msra.mxu0 %v1825
    %2444 = vmatprep.subr.bf16.mxu0 0
    %2445 = vmatpush1.bf16.msra.mxu0 %v1824
    %2446 = vmatprep.subr.bf16.mxu0 0
    %2447 = vmatpush1.bf16.msra.mxu0 %v1823
    %2448 = vmatprep.subr.bf16.mxu0 0
    %2449 = vmatpush1.bf16.msra.mxu0 %v1822
    %2450 = vmatprep.subr.bf16.mxu0 0
    %2451 = vmatpush2.bf16.msra.mxu0 %v1837
    %2452 = vmatprep.subr.bf16.mxu0 0
    %2453 = vmatpush2.bf16.msra.mxu0 %v1836
    %2454 = vmatprep.subr.bf16.mxu0 0
    %2455 = vmatpush2.bf16.msra.mxu0 %v1835
    %2456 = vmatprep.subr.bf16.mxu0 0
    %2457 = vmatpush2.bf16.msra.mxu0 %v1834
    %2458 = vmatprep.subr.bf16.mxu0 0
    %2459 = vmatpush2.bf16.msra.mxu0 %v1833
    %2460 = vmatprep.subr.bf16.mxu0 0
    %2461 = vmatpush2.bf16.msra.mxu0 %v1832
    %2462 = vmatprep.subr.bf16.mxu0 0
    %2463 = vmatpush2.bf16.msra.mxu0 %v1831
    %2464 = vmatprep.subr.bf16.mxu0 0
    %2465 = vmatpush2.bf16.msra.mxu0 %v1830
    %2466 = vmatprep.mubr.bf16.mxu0 %v189
    %2467 = vmatmul.mubr.bf16.gmra.mxu0 %v188
    %v2468 = vpop.f32.mrf.mxu0
    %v2469 = vadd.f32 %v2428, %v2468
    %v2470 = vpop.f32.mrf.mxu0
    %v2471 = vpop.f32.mrf.mxu0
    %v2472 = vadd.f32 %v2431, %v2471
    %v2473 = vpop.f32.mrf.mxu0
    %2474 = vdwg.mxu0
    %2475 = vmatprep.subr.bf16.mxu0 0
    %2476 = vmatpush1.bf16.msra.mxu0 %v1845
    %2477 = vmatprep.subr.bf16.mxu0 0
    %2478 = vmatpush1.bf16.msra.mxu0 %v1844
    %2479 = vmatprep.subr.bf16.mxu0 0
    %2480 = vmatpush1.bf16.msra.mxu0 %v1843
    %2481 = vmatprep.subr.bf16.mxu0 0
    %2482 = vmatpush1.bf16.msra.mxu0 %v1842
    %2483 = vmatprep.subr.bf16.mxu0 0
    %2484 = vmatpush1.bf16.msra.mxu0 %v1841
    %2485 = vmatprep.subr.bf16.mxu0 0
    %2486 = vmatpush1.bf16.msra.mxu0 %v1840
    %2487 = vmatprep.subr.bf16.mxu0 0
    %2488 = vmatpush1.bf16.msra.mxu0 %v1839
    %2489 = vmatprep.subr.bf16.mxu0 0
    %2490 = vmatpush1.bf16.msra.mxu0 %v1838
    %2491 = vmatprep.subr.bf16.mxu0 0
    %2492 = vmatpush2.bf16.msra.mxu0 %v1853
    %2493 = vmatprep.subr.bf16.mxu0 0
    %2494 = vmatpush2.bf16.msra.mxu0 %v1852
    %2495 = vmatprep.subr.bf16.mxu0 0
    %2496 = vmatpush2.bf16.msra.mxu0 %v1851
    %2497 = vmatprep.subr.bf16.mxu0 0
    %2498 = vmatpush2.bf16.msra.mxu0 %v1850
    %2499 = vmatprep.subr.bf16.mxu0 0
    %2500 = vmatpush2.bf16.msra.mxu0 %v1849
    %2501 = vmatprep.subr.bf16.mxu0 0
    %2502 = vmatpush2.bf16.msra.mxu0 %v1848
    %2503 = vmatprep.subr.bf16.mxu0 0
    %2504 = vmatpush2.bf16.msra.mxu0 %v1847
    %2505 = vmatprep.subr.bf16.mxu0 0
    %2506 = vmatpush2.bf16.msra.mxu0 %v1846
    %2507 = vmatprep.mubr.bf16.mxu0 %v191
    %2508 = vmatmul.mubr.bf16.gmra.mxu0 %v190
    %v2509 = vpop.f32.mrf.mxu0
    %v2510 = vadd.f32 %v2469, %v2509
    %v2511 = vpop.f32.mrf.mxu0
    %v2512 = vpop.f32.mrf.mxu0
    %v2513 = vadd.f32 %v2472, %v2512
    %v2514 = vpop.f32.mrf.mxu0
    %2515 = vdwg.mxu0
    %2516 = vmatprep.subr.bf16.mxu0 0
    %2517 = vmatpush1.bf16.msra.mxu0 %v1861
    %2518 = vmatprep.subr.bf16.mxu0 0
    %2519 = vmatpush1.bf16.msra.mxu0 %v1860
    %2520 = vmatprep.subr.bf16.mxu0 0
    %2521 = vmatpush1.bf16.msra.mxu0 %v1859
    %2522 = vmatprep.subr.bf16.mxu0 0
    %2523 = vmatpush1.bf16.msra.mxu0 %v1858
    %2524 = vmatprep.subr.bf16.mxu0 0
    %2525 = vmatpush1.bf16.msra.mxu0 %v1857
    %2526 = vmatprep.subr.bf16.mxu0 0
    %2527 = vmatpush1.bf16.msra.mxu0 %v1856
    %2528 = vmatprep.subr.bf16.mxu0 0
    %2529 = vmatpush1.bf16.msra.mxu0 %v1855
    %2530 = vmatprep.subr.bf16.mxu0 0
    %2531 = vmatpush1.bf16.msra.mxu0 %v1854
    %2532 = vmatprep.subr.bf16.mxu0 0
    %2533 = vmatpush2.bf16.msra.mxu0 %v1869
    %2534 = vmatprep.subr.bf16.mxu0 0
    %2535 = vmatpush2.bf16.msra.mxu0 %v1868
    %2536 = vmatprep.subr.bf16.mxu0 0
    %2537 = vmatpush2.bf16.msra.mxu0 %v1867
    %2538 = vmatprep.subr.bf16.mxu0 0
    %2539 = vmatpush2.bf16.msra.mxu0 %v1866
    %2540 = vmatprep.subr.bf16.mxu0 0
    %2541 = vmatpush2.bf16.msra.mxu0 %v1865
    %2542 = vmatprep.subr.bf16.mxu0 0
    %2543 = vmatpush2.bf16.msra.mxu0 %v1864
    %2544 = vmatprep.subr.bf16.mxu0 0
    %2545 = vmatpush2.bf16.msra.mxu0 %v1863
    %2546 = vmatprep.subr.bf16.mxu0 0
    %2547 = vmatpush2.bf16.msra.mxu0 %v1862
    %2548 = vmatprep.mubr.bf16.mxu0 %v193
    %2549 = vmatmul.mubr.bf16.gmra.mxu0 %v192
    %v2550 = vpop.f32.mrf.mxu0
    %v2551 = vadd.f32 %v2510, %v2550
    %v2552 = vpop.f32.mrf.mxu0
    %v2553 = vpop.f32.mrf.mxu0
    %v2554 = vadd.f32 %v2513, %v2553
    %v2555 = vpop.f32.mrf.mxu0
    %2556 = vdwg.mxu0
    %2557 = vmatprep.subr.bf16.mxu0 0
    %2558 = vmatpush1.bf16.msra.mxu0 %v1877
    %2559 = vmatprep.subr.bf16.mxu0 0
    %2560 = vmatpush1.bf16.msra.mxu0 %v1876
    %2561 = vmatprep.subr.bf16.mxu0 0
    %2562 = vmatpush1.bf16.msra.mxu0 %v1875
    %2563 = vmatprep.subr.bf16.mxu0 0
    %2564 = vmatpush1.bf16.msra.mxu0 %v1874
    %2565 = vmatprep.subr.bf16.mxu0 0
    %2566 = vmatpush1.bf16.msra.mxu0 %v1873
    %2567 = vmatprep.subr.bf16.mxu0 0
    %2568 = vmatpush1.bf16.msra.mxu0 %v1872
    %2569 = vmatprep.subr.bf16.mxu0 0
    %2570 = vmatpush1.bf16.msra.mxu0 %v1871
    %2571 = vmatprep.subr.bf16.mxu0 0
    %2572 = vmatpush1.bf16.msra.mxu0 %v1870
    %2573 = vmatprep.subr.bf16.mxu0 0
    %2574 = vmatpush2.bf16.msra.mxu0 %v1885
    %2575 = vmatprep.subr.bf16.mxu0 0
    %2576 = vmatpush2.bf16.msra.mxu0 %v1884
    %2577 = vmatprep.subr.bf16.mxu0 0
    %2578 = vmatpush2.bf16.msra.mxu0 %v1883
    %2579 = vmatprep.subr.bf16.mxu0 0
    %2580 = vmatpush2.bf16.msra.mxu0 %v1882
    %2581 = vmatprep.subr.bf16.mxu0 0
    %2582 = vmatpush2.bf16.msra.mxu0 %v1881
    %2583 = vmatprep.subr.bf16.mxu0 0
    %2584 = vmatpush2.bf16.msra.mxu0 %v1880
    %2585 = vmatprep.subr.bf16.mxu0 0
    %2586 = vmatpush2.bf16.msra.mxu0 %v1879
    %2587 = vmatprep.subr.bf16.mxu0 0
    %2588 = vmatpush2.bf16.msra.mxu0 %v1878
    %2589 = vmatprep.mubr.bf16.mxu0 %v195
    %2590 = vmatmul.mubr.bf16.gmra.mxu0 %v194
    %v2591 = vpop.f32.mrf.mxu0
    %v2592 = vadd.f32 %v2551, %v2591
    %v2593 = vpop.f32.mrf.mxu0
    %v2594 = vpop.f32.mrf.mxu0
    %v2595 = vadd.f32 %v2554, %v2594
    %v2596 = vpop.f32.mrf.mxu0
    %2597 = vdwg.mxu0
    %2598 = vmatprep.subr.bf16.mxu0 0
    %2599 = vmatpush1.bf16.msra.mxu0 %v1893
    %2600 = vmatprep.subr.bf16.mxu0 0
    %2601 = vmatpush1.bf16.msra.mxu0 %v1892
    %2602 = vmatprep.subr.bf16.mxu0 0
    %2603 = vmatpush1.bf16.msra.mxu0 %v1891
    %2604 = vmatprep.subr.bf16.mxu0 0
    %2605 = vmatpush1.bf16.msra.mxu0 %v1890
    %2606 = vmatprep.subr.bf16.mxu0 0
    %2607 = vmatpush1.bf16.msra.mxu0 %v1889
    %2608 = vmatprep.subr.bf16.mxu0 0
    %2609 = vmatpush1.bf16.msra.mxu0 %v1888
    %2610 = vmatprep.subr.bf16.mxu0 0
    %2611 = vmatpush1.bf16.msra.mxu0 %v1887
    %2612 = vmatprep.subr.bf16.mxu0 0
    %2613 = vmatpush1.bf16.msra.mxu0 %v1886
    %2614 = vmatprep.subr.bf16.mxu0 0
    %2615 = vmatpush2.bf16.msra.mxu0 %v1901
    %2616 = vmatprep.subr.bf16.mxu0 0
    %2617 = vmatpush2.bf16.msra.mxu0 %v1900
    %2618 = vmatprep.subr.bf16.mxu0 0
    %2619 = vmatpush2.bf16.msra.mxu0 %v1899
    %2620 = vmatprep.subr.bf16.mxu0 0
    %2621 = vmatpush2.bf16.msra.mxu0 %v1898
    %2622 = vmatprep.subr.bf16.mxu0 0
    %2623 = vmatpush2.bf16.msra.mxu0 %v1897
    %2624 = vmatprep.subr.bf16.mxu0 0
    %2625 = vmatpush2.bf16.msra.mxu0 %v1896
    %2626 = vmatprep.subr.bf16.mxu0 0
    %2627 = vmatpush2.bf16.msra.mxu0 %v1895
    %2628 = vmatprep.subr.bf16.mxu0 0
    %2629 = vmatpush2.bf16.msra.mxu0 %v1894
    %2630 = vmatprep.mubr.bf16.mxu0 %v197
    %2631 = vmatmul.mubr.bf16.gmra.mxu0 %v196
    %v2632 = vpop.f32.mrf.mxu0
    %v2633 = vadd.f32 %v2592, %v2632
    %v2634 = vpop.f32.mrf.mxu0
    %v2635 = vpop.f32.mrf.mxu0
    %v2636 = vadd.f32 %v2595, %v2635
    %v2637 = vpop.f32.mrf.mxu0
    %2638 = vdwg.mxu0
    %2639 = vmatprep.subr.bf16.mxu0 0
    %2640 = vmatpush1.bf16.msra.mxu0 %v1909
    %2641 = vmatprep.subr.bf16.mxu0 0
    %2642 = vmatpush1.bf16.msra.mxu0 %v1908
    %2643 = vmatprep.subr.bf16.mxu0 0
    %2644 = vmatpush1.bf16.msra.mxu0 %v1907
    %2645 = vmatprep.subr.bf16.mxu0 0
    %2646 = vmatpush1.bf16.msra.mxu0 %v1906
    %2647 = vmatprep.subr.bf16.mxu0 0
    %2648 = vmatpush1.bf16.msra.mxu0 %v1905
    %2649 = vmatprep.subr.bf16.mxu0 0
    %2650 = vmatpush1.bf16.msra.mxu0 %v1904
    %2651 = vmatprep.subr.bf16.mxu0 0
    %2652 = vmatpush1.bf16.msra.mxu0 %v1903
    %2653 = vmatprep.subr.bf16.mxu0 0
    %2654 = vmatpush1.bf16.msra.mxu0 %v1902
    %2655 = vmatprep.subr.bf16.mxu0 0
    %2656 = vmatpush2.bf16.msra.mxu0 %v1917
    %2657 = vmatprep.subr.bf16.mxu0 0
    %2658 = vmatpush2.bf16.msra.mxu0 %v1916
    %2659 = vmatprep.subr.bf16.mxu0 0
    %2660 = vmatpush2.bf16.msra.mxu0 %v1915
    %2661 = vmatprep.subr.bf16.mxu0 0
    %2662 = vmatpush2.bf16.msra.mxu0 %v1914
    %2663 = vmatprep.subr.bf16.mxu0 0
    %2664 = vmatpush2.bf16.msra.mxu0 %v1913
    %2665 = vmatprep.subr.bf16.mxu0 0
    %2666 = vmatpush2.bf16.msra.mxu0 %v1912
    %2667 = vmatprep.subr.bf16.mxu0 0
    %2668 = vmatpush2.bf16.msra.mxu0 %v1911
    %2669 = vmatprep.subr.bf16.mxu0 0
    %2670 = vmatpush2.bf16.msra.mxu0 %v1910
    %2671 = vmatprep.mubr.bf16.mxu0 %v199
    %2672 = vmatmul.mubr.bf16.gmra.mxu0 %v198
    %v2673 = vpop.f32.mrf.mxu0
    %v2674 = vadd.f32 %v2633, %v2673
    %v2675 = vpop.f32.mrf.mxu0
    %v2676 = vpop.f32.mrf.mxu0
    %v2677 = vadd.f32 %v2636, %v2676
    %v2678 = vpop.f32.mrf.mxu0
    %2679 = vdwg.mxu0
    %2680 = vmatprep.subr.bf16.mxu0 0
    %2681 = vmatpush1.bf16.msra.mxu0 %v1925
    %2682 = vmatprep.subr.bf16.mxu0 0
    %2683 = vmatpush1.bf16.msra.mxu0 %v1924
    %2684 = vmatprep.subr.bf16.mxu0 0
    %2685 = vmatpush1.bf16.msra.mxu0 %v1923
    %2686 = vmatprep.subr.bf16.mxu0 0
    %2687 = vmatpush1.bf16.msra.mxu0 %v1922
    %2688 = vmatprep.subr.bf16.mxu0 0
    %2689 = vmatpush1.bf16.msra.mxu0 %v1921
    %2690 = vmatprep.subr.bf16.mxu0 0
    %2691 = vmatpush1.bf16.msra.mxu0 %v1920
    %2692 = vmatprep.subr.bf16.mxu0 0
    %2693 = vmatpush1.bf16.msra.mxu0 %v1919
    %2694 = vmatprep.subr.bf16.mxu0 0
    %2695 = vmatpush1.bf16.msra.mxu0 %v1918
    %2696 = vmatprep.subr.bf16.mxu0 0
    %2697 = vmatpush2.bf16.msra.mxu0 %v1933
    %2698 = vmatprep.subr.bf16.mxu0 0
    %2699 = vmatpush2.bf16.msra.mxu0 %v1932
    %2700 = vmatprep.subr.bf16.mxu0 0
    %2701 = vmatpush2.bf16.msra.mxu0 %v1931
    %2702 = vmatprep.subr.bf16.mxu0 0
    %2703 = vmatpush2.bf16.msra.mxu0 %v1930
    %2704 = vmatprep.subr.bf16.mxu0 0
    %2705 = vmatpush2.bf16.msra.mxu0 %v1929
    %2706 = vmatprep.subr.bf16.mxu0 0
    %2707 = vmatpush2.bf16.msra.mxu0 %v1928
    %2708 = vmatprep.subr.bf16.mxu0 0
    %2709 = vmatpush2.bf16.msra.mxu0 %v1927
    %2710 = vmatprep.subr.bf16.mxu0 0
    %2711 = vmatpush2.bf16.msra.mxu0 %v1926
    %2712 = vmatprep.mubr.bf16.mxu0 %v201
    %2713 = vmatmul.mubr.bf16.gmra.mxu0 %v200
    %v2714 = vpop.f32.mrf.mxu0
    %v2715 = vadd.f32 %v2674, %v2714
    %v2716 = vpop.f32.mrf.mxu0
    %v2717 = vpop.f32.mrf.mxu0
    %v2718 = vadd.f32 %v2677, %v2717
    %v2719 = vpop.f32.mrf.mxu0
    %2720 = vdwg.mxu0
    %2721 = vmatprep.subr.bf16.mxu0 0
    %2722 = vmatpush1.bf16.msra.mxu0 %v1941
    %2723 = vmatprep.subr.bf16.mxu0 0
    %2724 = vmatpush1.bf16.msra.mxu0 %v1940
    %2725 = vmatprep.subr.bf16.mxu0 0
    %2726 = vmatpush1.bf16.msra.mxu0 %v1939
    %2727 = vmatprep.subr.bf16.mxu0 0
    %2728 = vmatpush1.bf16.msra.mxu0 %v1938
    %2729 = vmatprep.subr.bf16.mxu0 0
    %2730 = vmatpush1.bf16.msra.mxu0 %v1937
    %2731 = vmatprep.subr.bf16.mxu0 0
    %2732 = vmatpush1.bf16.msra.mxu0 %v1936
    %2733 = vmatprep.subr.bf16.mxu0 0
    %2734 = vmatpush1.bf16.msra.mxu0 %v1935
    %2735 = vmatprep.subr.bf16.mxu0 0
    %2736 = vmatpush1.bf16.msra.mxu0 %v1934
    %2737 = vmatprep.subr.bf16.mxu0 0
    %2738 = vmatpush2.bf16.msra.mxu0 %v1949
    %2739 = vmatprep.subr.bf16.mxu0 0
    %2740 = vmatpush2.bf16.msra.mxu0 %v1948
    %2741 = vmatprep.subr.bf16.mxu0 0
    %2742 = vmatpush2.bf16.msra.mxu0 %v1947
    %2743 = vmatprep.subr.bf16.mxu0 0
    %2744 = vmatpush2.bf16.msra.mxu0 %v1946
    %2745 = vmatprep.subr.bf16.mxu0 0
    %2746 = vmatpush2.bf16.msra.mxu0 %v1945
    %2747 = vmatprep.subr.bf16.mxu0 0
    %2748 = vmatpush2.bf16.msra.mxu0 %v1944
    %2749 = vmatprep.subr.bf16.mxu0 0
    %2750 = vmatpush2.bf16.msra.mxu0 %v1943
    %2751 = vmatprep.subr.bf16.mxu0 0
    %2752 = vmatpush2.bf16.msra.mxu0 %v1942
    %2753 = vmatprep.mubr.bf16.mxu0 %v203
    %2754 = vmatmul.mubr.bf16.gmra.mxu0 %v202
    %v2755 = vpop.f32.mrf.mxu0
    %v2756 = vadd.f32 %v2715, %v2755
    %v2757 = vpop.f32.mrf.mxu0
    %v2758 = vpop.f32.mrf.mxu0
    %v2759 = vadd.f32 %v2718, %v2758
    %v2760 = vpop.f32.mrf.mxu0
    %2761 = vdwg.mxu0
    %2762 = vmatprep.subr.bf16.mxu0 0
    %2763 = vmatpush1.bf16.msra.mxu0 %v1957
    %2764 = vmatprep.subr.bf16.mxu0 0
    %2765 = vmatpush1.bf16.msra.mxu0 %v1956
    %2766 = vmatprep.subr.bf16.mxu0 0
    %2767 = vmatpush1.bf16.msra.mxu0 %v1955
    %2768 = vmatprep.subr.bf16.mxu0 0
    %2769 = vmatpush1.bf16.msra.mxu0 %v1954
    %2770 = vmatprep.subr.bf16.mxu0 0
    %2771 = vmatpush1.bf16.msra.mxu0 %v1953
    %2772 = vmatprep.subr.bf16.mxu0 0
    %2773 = vmatpush1.bf16.msra.mxu0 %v1952
    %2774 = vmatprep.subr.bf16.mxu0 0
    %2775 = vmatpush1.bf16.msra.mxu0 %v1951
    %2776 = vmatprep.subr.bf16.mxu0 0
    %2777 = vmatpush1.bf16.msra.mxu0 %v1950
    %2778 = vmatprep.subr.bf16.mxu0 0
    %2779 = vmatpush2.bf16.msra.mxu0 %v1965
    %2780 = vmatprep.subr.bf16.mxu0 0
    %2781 = vmatpush2.bf16.msra.mxu0 %v1964
    %2782 = vmatprep.subr.bf16.mxu0 0
    %2783 = vmatpush2.bf16.msra.mxu0 %v1963
    %2784 = vmatprep.subr.bf16.mxu0 0
    %2785 = vmatpush2.bf16.msra.mxu0 %v1962
    %2786 = vmatprep.subr.bf16.mxu0 0
    %2787 = vmatpush2.bf16.msra.mxu0 %v1961
    %2788 = vmatprep.subr.bf16.mxu0 0
    %2789 = vmatpush2.bf16.msra.mxu0 %v1960
    %2790 = vmatprep.subr.bf16.mxu0 0
    %2791 = vmatpush2.bf16.msra.mxu0 %v1959
    %2792 = vmatprep.subr.bf16.mxu0 0
    %2793 = vmatpush2.bf16.msra.mxu0 %v1958
    %2794 = vmatprep.mubr.bf16.mxu0 %v205
    %2795 = vmatmul.mubr.bf16.gmra.mxu0 %v204
    %v2796 = vpop.f32.mrf.mxu0
    %v2797 = vadd.f32 %v2756, %v2796
    %v2798 = vpop.f32.mrf.mxu0
    %v2799 = vpop.f32.mrf.mxu0
    %v2800 = vadd.f32 %v2759, %v2799
    %v2801 = vpop.f32.mrf.mxu0
    %2802 = vdwg.mxu0
    %2803 = vmatprep.subr.bf16.mxu0 0
    %2804 = vmatpush1.bf16.msra.mxu0 %v1973
    %2805 = vmatprep.subr.bf16.mxu0 0
    %2806 = vmatpush1.bf16.msra.mxu0 %v1972
    %2807 = vmatprep.subr.bf16.mxu0 0
    %2808 = vmatpush1.bf16.msra.mxu0 %v1971
    %2809 = vmatprep.subr.bf16.mxu0 0
    %2810 = vmatpush1.bf16.msra.mxu0 %v1970
    %2811 = vmatprep.subr.bf16.mxu0 0
    %2812 = vmatpush1.bf16.msra.mxu0 %v1969
    %2813 = vmatprep.subr.bf16.mxu0 0
    %2814 = vmatpush1.bf16.msra.mxu0 %v1968
    %2815 = vmatprep.subr.bf16.mxu0 0
    %2816 = vmatpush1.bf16.msra.mxu0 %v1967
    %2817 = vmatprep.subr.bf16.mxu0 0
    %2818 = vmatpush1.bf16.msra.mxu0 %v1966
    %2819 = vmatprep.subr.bf16.mxu0 0
    %2820 = vmatpush2.bf16.msra.mxu0 %v1981
    %2821 = vmatprep.subr.bf16.mxu0 0
    %2822 = vmatpush2.bf16.msra.mxu0 %v1980
    %2823 = vmatprep.subr.bf16.mxu0 0
    %2824 = vmatpush2.bf16.msra.mxu0 %v1979
    %2825 = vmatprep.subr.bf16.mxu0 0
    %2826 = vmatpush2.bf16.msra.mxu0 %v1978
    %2827 = vmatprep.subr.bf16.mxu0 0
    %2828 = vmatpush2.bf16.msra.mxu0 %v1977
    %2829 = vmatprep.subr.bf16.mxu0 0
    %2830 = vmatpush2.bf16.msra.mxu0 %v1976
    %2831 = vmatprep.subr.bf16.mxu0 0
    %2832 = vmatpush2.bf16.msra.mxu0 %v1975
    %2833 = vmatprep.subr.bf16.mxu0 0
    %2834 = vmatpush2.bf16.msra.mxu0 %v1974
    %2835 = vmatprep.mubr.bf16.mxu0 %v207
    %2836 = vmatmul.mubr.bf16.gmra.mxu0 %v206
    %v2837 = vpop.f32.mrf.mxu0
    %v2838 = vadd.f32 %v2797, %v2837
    %v2839 = vpop.f32.mrf.mxu0
    %v2840 = vpop.f32.mrf.mxu0
    %v2841 = vadd.f32 %v2800, %v2840
    %v2842 = vpop.f32.mrf.mxu0
    %2843 = vdwg.mxu0
    %2844 = vmatprep.subr.bf16.mxu0 0
    %2845 = vmatpush1.bf16.msra.mxu0 %v1989
    %2846 = vmatprep.subr.bf16.mxu0 0
    %2847 = vmatpush1.bf16.msra.mxu0 %v1988
    %2848 = vmatprep.subr.bf16.mxu0 0
    %2849 = vmatpush1.bf16.msra.mxu0 %v1987
    %2850 = vmatprep.subr.bf16.mxu0 0
    %2851 = vmatpush1.bf16.msra.mxu0 %v1986
    %2852 = vmatprep.subr.bf16.mxu0 0
    %2853 = vmatpush1.bf16.msra.mxu0 %v1985
    %2854 = vmatprep.subr.bf16.mxu0 0
    %2855 = vmatpush1.bf16.msra.mxu0 %v1984
    %2856 = vmatprep.subr.bf16.mxu0 0
    %2857 = vmatpush1.bf16.msra.mxu0 %v1983
    %2858 = vmatprep.subr.bf16.mxu0 0
    %2859 = vmatpush1.bf16.msra.mxu0 %v1982
    %2860 = vmatprep.subr.bf16.mxu0 0
    %2861 = vmatpush2.bf16.msra.mxu0 %v1997
    %2862 = vmatprep.subr.bf16.mxu0 0
    %2863 = vmatpush2.bf16.msra.mxu0 %v1996
    %2864 = vmatprep.subr.bf16.mxu0 0
    %2865 = vmatpush2.bf16.msra.mxu0 %v1995
    %2866 = vmatprep.subr.bf16.mxu0 0
    %2867 = vmatpush2.bf16.msra.mxu0 %v1994
    %2868 = vmatprep.subr.bf16.mxu0 0
    %2869 = vmatpush2.bf16.msra.mxu0 %v1993
    %2870 = vmatprep.subr.bf16.mxu0 0
    %2871 = vmatpush2.bf16.msra.mxu0 %v1992
    %2872 = vmatprep.subr.bf16.mxu0 0
    %2873 = vmatpush2.bf16.msra.mxu0 %v1991
    %2874 = vmatprep.subr.bf16.mxu0 0
    %2875 = vmatpush2.bf16.msra.mxu0 %v1990
    %2876 = vmatprep.mubr.bf16.mxu0 %v209
    %2877 = vmatmul.mubr.bf16.gmra.mxu0 %v208
    %v2878 = vpop.f32.mrf.mxu0
    %v2879 = vadd.f32 %v2838, %v2878
    %v2880 = vpop.f32.mrf.mxu0
    %v2881 = vpop.f32.mrf.mxu0
    %v2882 = vadd.f32 %v2841, %v2881
    %v2883 = vpop.f32.mrf.mxu0
    %2884 = vdwg.mxu0
    %2885 = vmatprep.subr.bf16.mxu0 0
    %2886 = vmatpush1.bf16.msra.mxu0 %v2005
    %2887 = vmatprep.subr.bf16.mxu0 0
    %2888 = vmatpush1.bf16.msra.mxu0 %v2004
    %2889 = vmatprep.subr.bf16.mxu0 0
    %2890 = vmatpush1.bf16.msra.mxu0 %v2003
    %2891 = vmatprep.subr.bf16.mxu0 0
    %2892 = vmatpush1.bf16.msra.mxu0 %v2002
    %2893 = vmatprep.subr.bf16.mxu0 0
    %2894 = vmatpush1.bf16.msra.mxu0 %v2001
    %2895 = vmatprep.subr.bf16.mxu0 0
    %2896 = vmatpush1.bf16.msra.mxu0 %v2000
    %2897 = vmatprep.subr.bf16.mxu0 0
    %2898 = vmatpush1.bf16.msra.mxu0 %v1999
    %2899 = vmatprep.subr.bf16.mxu0 0
    %2900 = vmatpush1.bf16.msra.mxu0 %v1998
    %2901 = vmatprep.subr.bf16.mxu0 0
    %2902 = vmatpush2.bf16.msra.mxu0 %v2013
    %2903 = vmatprep.subr.bf16.mxu0 0
    %2904 = vmatpush2.bf16.msra.mxu0 %v2012
    %2905 = vmatprep.subr.bf16.mxu0 0
    %2906 = vmatpush2.bf16.msra.mxu0 %v2011
    %2907 = vmatprep.subr.bf16.mxu0 0
    %2908 = vmatpush2.bf16.msra.mxu0 %v2010
    %2909 = vmatprep.subr.bf16.mxu0 0
    %2910 = vmatpush2.bf16.msra.mxu0 %v2009
    %2911 = vmatprep.subr.bf16.mxu0 0
    %2912 = vmatpush2.bf16.msra.mxu0 %v2008
    %2913 = vmatprep.subr.bf16.mxu0 0
    %2914 = vmatpush2.bf16.msra.mxu0 %v2007
    %2915 = vmatprep.subr.bf16.mxu0 0
    %2916 = vmatpush2.bf16.msra.mxu0 %v2006
    %2917 = vmatprep.mubr.bf16.mxu0 %v211
    %2918 = vmatmul.mubr.bf16.gmra.mxu0 %v210
    %v2919 = vpop.f32.mrf.mxu0
    %v2920 = vadd.f32 %v2879, %v2919
    %v2921 = vpop.f32.mrf.mxu0
    %v2922 = vpop.f32.mrf.mxu0
    %v2923 = vadd.f32 %v2882, %v2922
    %v2924 = vpop.f32.mrf.mxu0
    %2925 = vdwg.mxu0
    %2926 = vadd.xlane.f32.xlu0 %v2920
    %v2927 = vpop.xlane.xlu0 %2926
    %2928 = vadd.xlane.f32.xlu0 %v2923
    %v2929 = vpop.xlane.xlu0 %2928
    %v2930 = vmul.f32 %v2920, %v2920
    %v2931 = vmul.f32 %v2923, %v2923
    %2932 = vadd.xlane.f32.xlu0 %v2930
    %v2933 = vpop.xlane.xlu0 %2932
    %2934 = vadd.xlane.f32.xlu0 %v2931
    %v2935 = vpop.xlane.xlu0 %2934
    %v2936 = vmul.f32 %v2927, 0.0078125
    %v2937 = vmul.f32 %v2929, 0.0078125
    %v2938 = vmul.f32 %v2933, 0.0078125
    %v2939 = vmul.f32 %v2935, 0.0078125
    %v2940 = vmul.f32 %v2936, %v2936
    %v2941 = vmul.f32 %v2937, %v2937
    %v2942 = vsub.f32 %v2938, %v2940
    %v2943 = vsub.f32 %v2939, %v2941
    %v2944 = vsub.f32 %v2920, %v2936
    %v2945 = vsub.f32 %v2923, %v2937
    %v2946 = vadd.f32 %v2942, 1e-05
    %v2947 = vadd.f32 %v2943, 1e-05
    %v2948 = vrsqrt.pop %v2946
    %v2949 = vrsqrt.pop %v2947
    %v2950 = vmul.f32 %v2944, %v2948
    %v2951 = vmul.f32 %v2945, %v2949
    %v2952 = vld [vmem:[#allocation8] sm:$0xf]
    %v2953 = vld [vmem:[#allocation8 + $0x4] sm:$0xf]
    %v2954 = vld [vmem:[#allocation8 + $0x8] sm:$0xf]
    %v2955 = vld [vmem:[#allocation8 + $0xc] sm:$0xf]
    %v2956 = vld [vmem:[#allocation8 + $0x10] sm:$0xf]
    %v2957 = vld [vmem:[#allocation8 + $0x14] sm:$0xf]
    %v2958 = vld [vmem:[#allocation8 + $0x18] sm:$0xf]
    %v2959 = vld [vmem:[#allocation8 + $0x1c] sm:$0xf]
    %v2960 = vld [vmem:[#allocation8 + $0x20] sm:$0xf]
    %v2961 = vld [vmem:[#allocation8 + $0x24] sm:$0xf]
    %v2962 = vld [vmem:[#allocation8 + $0x28] sm:$0xf]
    %v2963 = vld [vmem:[#allocation8 + $0x2c] sm:$0xf]
    %v2964 = vld [vmem:[#allocation8 + $0x30] sm:$0xf]
    %v2965 = vld [vmem:[#allocation8 + $0x34] sm:$0xf]
    %v2966 = vld [vmem:[#allocation8 + $0x38] sm:$0xf]
    %v2967 = vld [vmem:[#allocation8 + $0x3c] sm:$0xf]
    %v2968 = vld [vmem:[%s5] sm:$0x1]
    %v2970 = vlaneseq
    %v2971 = vshrl.u32 %v2970, 7
    %v2972 = vsub.s32 0, %v2971
    %v2973 = vrot.slane %v2968, %v2972
    %v2991 = vunpack.c.l.b16 %v2952
    %v2992 = vunpack.c.l.b16 %v2953
    %v2993 = vunpack.c.l.b16 %v2954
    %v2994 = vunpack.c.l.b16 %v2955
    %v2995 = vunpack.c.l.b16 %v2956
    %v2996 = vunpack.c.l.b16 %v2957
    %v2997 = vunpack.c.l.b16 %v2958
    %v2998 = vunpack.c.l.b16 %v2959
    %v2999 = vunpack.c.l.b16 %v2960
    %v3000 = vunpack.c.l.b16 %v2961
    %v3001 = vunpack.c.l.b16 %v2962
    %v3002 = vunpack.c.l.b16 %v2963
    %v3003 = vunpack.c.l.b16 %v2964
    %v3004 = vunpack.c.l.b16 %v2965
    %v3005 = vunpack.c.l.b16 %v2966
    %v3006 = vunpack.c.l.b16 %v2967
    %v3007 = vpack.c.b16 %v2992, %v2991
    %v3008 = vpack.c.b16 %v2994, %v2993
    %v3009 = vpack.c.b16 %v2996, %v2995
    %v3010 = vpack.c.b16 %v2998, %v2997
    %v3011 = vpack.c.b16 %v3000, %v2999
    %v3012 = vpack.c.b16 %v3002, %v3001
    %v3013 = vpack.c.b16 %v3004, %v3003
    %v3014 = vpack.c.b16 %v3006, %v3005
    %3023 = vmatprep.subr.bf16.mxu0 0
    %3024 = vmatpush1.bf16.msra.mxu0 %v3014
    %3025 = vmatprep.subr.bf16.mxu0 0
    %3026 = vmatpush1.bf16.msra.mxu0 %v3013
    %3027 = vmatprep.subr.bf16.mxu0 0
    %3028 = vmatpush1.bf16.msra.mxu0 %v3012
    %3029 = vmatprep.subr.bf16.mxu0 0
    %3030 = vmatpush1.bf16.msra.mxu0 %v3011
    %3031 = vmatprep.subr.bf16.mxu0 0
    %3032 = vmatpush1.bf16.msra.mxu0 %v3010
    %3033 = vmatprep.subr.bf16.mxu0 0
    %3034 = vmatpush1.bf16.msra.mxu0 %v3009
    %3035 = vmatprep.subr.bf16.mxu0 0
    %3036 = vmatpush1.bf16.msra.mxu0 %v3008
    %3037 = vmatprep.subr.bf16.mxu0 0
    %3038 = vmatpush1.bf16.msra.mxu0 %v3007
    %3039 = vmatprep.subr.bf16.mxu0 0
    %3040 = vmatpush2.bf16.msra.mxu0 0
    %3041 = vmatprep.subr.bf16.mxu0 0
    %3042 = vmatpush2.bf16.msra.mxu0 0
    %3043 = vmatprep.subr.bf16.mxu0 0
    %3044 = vmatpush2.bf16.msra.mxu0 0
    %3045 = vmatprep.subr.bf16.mxu0 0
    %3046 = vmatpush2.bf16.msra.mxu0 0
    %3047 = vmatprep.subr.bf16.mxu0 0
    %3048 = vmatpush2.bf16.msra.mxu0 0
    %3049 = vmatprep.subr.bf16.mxu0 0
    %3050 = vmatpush2.bf16.msra.mxu0 0
    %3051 = vmatprep.subr.bf16.mxu0 0
    %3052 = vmatpush2.bf16.msra.mxu0 0
    %3053 = vmatprep.subr.bf16.mxu0 0
    %3054 = vmatpush2.bf16.msra.mxu0 0
    %3055 = vmatprep.mubr.bf16.mxu0 0
    %3056 = vmatmul.mubr.bf16.gmra.mxu0 %v214
    %v3057 = vpop.f32.mrf.mxu0
    %v3058 = vadd.f32 %v2973, %v3057
    %v3059 = vpop.f32.mrf.mxu0
    %v3060 = vpop.f32.mrf.mxu0
    %v3061 = vadd.f32 %v2973, %v3060
    %v3062 = vpop.f32.mrf.mxu0
    %3063 = vdwg.mxu0
    %3064 = vadd.xlane.f32.xlu0 %v3058
    %v3065 = vpop.xlane.xlu0 %3064
    %3066 = vadd.xlane.f32.xlu0 %v3061
    %v3067 = vpop.xlane.xlu0 %3066
    %v3068 = vmul.f32 %v3058, %v3058
    %v3069 = vmul.f32 %v3061, %v3061
    %3070 = vadd.xlane.f32.xlu0 %v3068
    %v3071 = vpop.xlane.xlu0 %3070
    %3072 = vadd.xlane.f32.xlu0 %v3069
    %v3073 = vpop.xlane.xlu0 %3072
    %v3074 = vmul.f32 %v3065, 0.0078125
    %v3075 = vmul.f32 %v3067, 0.0078125
    %v3076 = vmul.f32 %v3071, 0.0078125
    %v3077 = vmul.f32 %v3073, 0.0078125
    %v3078 = vmul.f32 %v3074, %v3074
    %v3079 = vmul.f32 %v3075, %v3075
    %v3080 = vsub.f32 %v3076, %v3078
    %v3081 = vsub.f32 %v3077, %v3079
    %v3082 = vsub.f32 %v3058, %v3074
    %v3083 = vsub.f32 %v3061, %v3075
    %v3084 = vadd.f32 %v3080, 1e-05
    %v3085 = vadd.f32 %v3081, 1e-05
    %v3086 = vrsqrt.pop %v3084
    %v3087 = vrsqrt.pop %v3085
    %v3088 = vmul.f32 %v3082, %v3086
    %v3089 = vmul.f32 %v3083, %v3087
    %v3090 = vpack.c.bf16 %v2951, %v2950
    %v3091 = vld [vmem:[#allocation10] sm:$0xf]
    %v3092 = vld [vmem:[#allocation10 + $0x4] sm:$0xf]
    %v3093 = vld [vmem:[#allocation10 + $0x8] sm:$0xf]
    %v3094 = vld [vmem:[#allocation10 + $0xc] sm:$0xf]
    %v3095 = vld [vmem:[#allocation10 + $0x10] sm:$0xf]
    %v3096 = vld [vmem:[#allocation10 + $0x14] sm:$0xf]
    %v3097 = vld [vmem:[#allocation10 + $0x18] sm:$0xf]
    %v3098 = vld [vmem:[#allocation10 + $0x1c] sm:$0xf]
    %v3099 = vld [vmem:[#allocation10 + $0x20] sm:$0xf]
    %v3100 = vld [vmem:[#allocation10 + $0x24] sm:$0xf]
    %v3101 = vld [vmem:[#allocation10 + $0x28] sm:$0xf]
    %v3102 = vld [vmem:[#allocation10 + $0x2c] sm:$0xf]
    %v3103 = vld [vmem:[#allocation10 + $0x30] sm:$0xf]
    %v3104 = vld [vmem:[#allocation10 + $0x34] sm:$0xf]
    %v3105 = vld [vmem:[#allocation10 + $0x38] sm:$0xf]
    %v3106 = vld [vmem:[#allocation10 + $0x3c] sm:$0xf]
    %v3107 = vpack.c.bf16 %v3089, %v3088
    %v3108 = vld [vmem:[#allocation11] sm:$0xf]
    %v3109 = vld [vmem:[#allocation11 + $0x4] sm:$0xf]
    %v3110 = vld [vmem:[#allocation11 + $0x8] sm:$0xf]
    %v3111 = vld [vmem:[#allocation11 + $0xc] sm:$0xf]
    %v3112 = vld [vmem:[#allocation11 + $0x10] sm:$0xf]
    %v3113 = vld [vmem:[#allocation11 + $0x14] sm:$0xf]
    %v3114 = vld [vmem:[#allocation11 + $0x18] sm:$0xf]
    %v3115 = vld [vmem:[#allocation11 + $0x1c] sm:$0xf]
    %v3116 = vld [vmem:[#allocation11 + $0x20] sm:$0xf]
    %v3117 = vld [vmem:[#allocation11 + $0x24] sm:$0xf]
    %v3118 = vld [vmem:[#allocation11 + $0x28] sm:$0xf]
    %v3119 = vld [vmem:[#allocation11 + $0x2c] sm:$0xf]
    %v3120 = vld [vmem:[#allocation11 + $0x30] sm:$0xf]
    %v3121 = vld [vmem:[#allocation11 + $0x34] sm:$0xf]
    %v3122 = vld [vmem:[#allocation11 + $0x38] sm:$0xf]
    %v3123 = vld [vmem:[#allocation11 + $0x3c] sm:$0xf]
    %v3140 = vunpack.c.l.b16 %v3108
    %v3141 = vunpack.c.l.b16 %v3109
    %v3142 = vunpack.c.l.b16 %v3110
    %v3143 = vunpack.c.l.b16 %v3111
    %v3144 = vunpack.c.l.b16 %v3112
    %v3145 = vunpack.c.l.b16 %v3113
    %v3146 = vunpack.c.l.b16 %v3114
    %v3147 = vunpack.c.l.b16 %v3115
    %v3148 = vunpack.c.l.b16 %v3116
    %v3149 = vunpack.c.l.b16 %v3117
    %v3150 = vunpack.c.l.b16 %v3118
    %v3151 = vunpack.c.l.b16 %v3119
    %v3152 = vunpack.c.l.b16 %v3120
    %v3153 = vunpack.c.l.b16 %v3121
    %v3154 = vunpack.c.l.b16 %v3122
    %v3155 = vunpack.c.l.b16 %v3123
    %v3156 = vpack.c.b16 %v3141, %v3140
    %v3157 = vpack.c.b16 %v3143, %v3142
    %v3158 = vpack.c.b16 %v3145, %v3144
    %v3159 = vpack.c.b16 %v3147, %v3146
    %v3160 = vpack.c.b16 %v3149, %v3148
    %v3161 = vpack.c.b16 %v3151, %v3150
    %v3162 = vpack.c.b16 %v3153, %v3152
    %v3163 = vpack.c.b16 %v3155, %v3154
    %3172 = vmatprep.subr.bf16.mxu0 0
    %3173 = vmatpush1.bf16.msra.mxu0 %v3163
    %3174 = vmatprep.subr.bf16.mxu0 0
    %3175 = vmatpush1.bf16.msra.mxu0 %v3162
    %3176 = vmatprep.subr.bf16.mxu0 0
    %3177 = vmatpush1.bf16.msra.mxu0 %v3161
    %3178 = vmatprep.subr.bf16.mxu0 0
    %3179 = vmatpush1.bf16.msra.mxu0 %v3160
    %3180 = vmatprep.subr.bf16.mxu0 0
    %3181 = vmatpush1.bf16.msra.mxu0 %v3159
    %3182 = vmatprep.subr.bf16.mxu0 0
    %3183 = vmatpush1.bf16.msra.mxu0 %v3158
    %3184 = vmatprep.subr.bf16.mxu0 0
    %3185 = vmatpush1.bf16.msra.mxu0 %v3157
    %3186 = vmatprep.subr.bf16.mxu0 0
    %3187 = vmatpush1.bf16.msra.mxu0 %v3156
    %3188 = vmatprep.subr.bf16.mxu0 0
    %3189 = vmatpush2.bf16.msra.mxu0 0
    %3190 = vmatprep.subr.bf16.mxu0 0
    %3191 = vmatpush2.bf16.msra.mxu0 0
    %3192 = vmatprep.subr.bf16.mxu0 0
    %3193 = vmatpush2.bf16.msra.mxu0 0
    %3194 = vmatprep.subr.bf16.mxu0 0
    %3195 = vmatpush2.bf16.msra.mxu0 0
    %3196 = vmatprep.subr.bf16.mxu0 0
    %3197 = vmatpush2.bf16.msra.mxu0 0
    %3198 = vmatprep.subr.bf16.mxu0 0
    %3199 = vmatpush2.bf16.msra.mxu0 0
    %3200 = vmatprep.subr.bf16.mxu0 0
    %3201 = vmatpush2.bf16.msra.mxu0 0
    %3202 = vmatprep.subr.bf16.mxu0 0
    %3203 = vmatpush2.bf16.msra.mxu0 0
    %3204 = vmatprep.mubr.bf16.mxu0 0
    %3205 = vmatmul.mubr.bf16.gmra.mxu0 %v3107
    %v3206 = vpop.f32.mrf.mxu0
    %v3207 = vadd.f32 0.0, %v3206
    %v3208 = vpop.f32.mrf.mxu0
    %v3209 = vpop.f32.mrf.mxu0
    %v3210 = vadd.f32 0.0, %v3209
    %v3211 = vpop.f32.mrf.mxu0
    %3212 = vdwg.mxu0
    %v3229 = vunpack.c.l.b16 %v3091
    %v3230 = vunpack.c.l.b16 %v3092
    %v3231 = vunpack.c.l.b16 %v3093
    %v3232 = vunpack.c.l.b16 %v3094
    %v3233 = vunpack.c.l.b16 %v3095
    %v3234 = vunpack.c.l.b16 %v3096
    %v3235 = vunpack.c.l.b16 %v3097
    %v3236 = vunpack.c.l.b16 %v3098
    %v3237 = vunpack.c.l.b16 %v3099
    %v3238 = vunpack.c.l.b16 %v3100
    %v3239 = vunpack.c.l.b16 %v3101
    %v3240 = vunpack.c.l.b16 %v3102
    %v3241 = vunpack.c.l.b16 %v3103
    %v3242 = vunpack.c.l.b16 %v3104
    %v3243 = vunpack.c.l.b16 %v3105
    %v3244 = vunpack.c.l.b16 %v3106
    %v3245 = vpack.c.b16 %v3230, %v3229
    %v3246 = vpack.c.b16 %v3232, %v3231
    %v3247 = vpack.c.b16 %v3234, %v3233
    %v3248 = vpack.c.b16 %v3236, %v3235
    %v3249 = vpack.c.b16 %v3238, %v3237
    %v3250 = vpack.c.b16 %v3240, %v3239
    %v3251 = vpack.c.b16 %v3242, %v3241
    %v3252 = vpack.c.b16 %v3244, %v3243
    %3261 = vmatprep.subr.bf16.mxu0 0
    %3262 = vmatpush1.bf16.msra.mxu0 %v3252
    %3263 = vmatprep.subr.bf16.mxu0 0
    %3264 = vmatpush1.bf16.msra.mxu0 %v3251
    %3265 = vmatprep.subr.bf16.mxu0 0
    %3266 = vmatpush1.bf16.msra.mxu0 %v3250
    %3267 = vmatprep.subr.bf16.mxu0 0
    %3268 = vmatpush1.bf16.msra.mxu0 %v3249
    %3269 = vmatprep.subr.bf16.mxu0 0
    %3270 = vmatpush1.bf16.msra.mxu0 %v3248
    %3271 = vmatprep.subr.bf16.mxu0 0
    %3272 = vmatpush1.bf16.msra.mxu0 %v3247
    %3273 = vmatprep.subr.bf16.mxu0 0
    %3274 = vmatpush1.bf16.msra.mxu0 %v3246
    %3275 = vmatprep.subr.bf16.mxu0 0
    %3276 = vmatpush1.bf16.msra.mxu0 %v3245
    %3277 = vmatprep.subr.bf16.mxu0 0
    %3278 = vmatpush2.bf16.msra.mxu0 0
    %3279 = vmatprep.subr.bf16.mxu0 0
    %3280 = vmatpush2.bf16.msra.mxu0 0
    %3281 = vmatprep.subr.bf16.mxu0 0
    %3282 = vmatpush2.bf16.msra.mxu0 0
    %3283 = vmatprep.subr.bf16.mxu0 0
    %3284 = vmatpush2.bf16.msra.mxu0 0
    %3285 = vmatprep.subr.bf16.mxu0 0
    %3286 = vmatpush2.bf16.msra.mxu0 0
    %3287 = vmatprep.subr.bf16.mxu0 0
    %3288 = vmatpush2.bf16.msra.mxu0 0
    %3289 = vmatprep.subr.bf16.mxu0 0
    %3290 = vmatpush2.bf16.msra.mxu0 0
    %3291 = vmatprep.subr.bf16.mxu0 0
    %3292 = vmatpush2.bf16.msra.mxu0 0
    %3293 = vmatprep.mubr.bf16.mxu0 0
    %3294 = vmatmul.mubr.bf16.gmra.mxu0 %v3090
    %v3295 = vpop.f32.mrf.mxu0
    %v3296 = vadd.f32 %v3207, %v3295
    %v3297 = vpop.f32.mrf.mxu0
    %v3298 = vpop.f32.mrf.mxu0
    %v3299 = vadd.f32 %v3210, %v3298
    %v3300 = vpop.f32.mrf.mxu0
    %3301 = vdwg.mxu0
    %v3302 = vld [vmem:[%s8] sm:$0x1]
    %v3304 = vlaneseq
    %v3305 = vshrl.u32 %v3304, 7
    %v3306 = vsub.s32 0, %v3305
    %v3307 = vrot.slane %v3302, %v3306
    %v3309 = vadd.f32 %v3296, %v3307
    %v3310 = vadd.f32 %v3299, %v3307
    %3311 = vst [vmem:[#allocation13] sm:$0xff] %v3309
    %3312 = vst [vmem:[#allocation13 + $0x8] sm:$0xff] %v3310
    // Predicated region
    $region62: #{tpu_custom_call.1} parent=1 // pred_check
      _
    $region63: #{tpu_custom_call.1} parent=1 // pred_check_branch
      %3314 = sbr.rel (0) target = $region65
    $region64: #{tpu_custom_call.1} parent=1 // pred_region
      %s3316 = ssub.s32 256, 256
      %3317 = vsyncadd [#allocation4], %s3316
      %s3318 = sshll.u32 [#allocation13], 4
      %s3319 = int_to_ptr.vmem [resolvable:$true] %s3318
      %3324 = dma.vmem_to_hbm [thread:$0]  %s3319, 256, %s9, [#allocation4], 128, 128, 8
    $region65: #{tpu_custom_call.1} parent=1 // pred_fallthru
      _
    // Predicated region
    $region66: #{tpu_custom_call.1} parent=1 // pred_check
      _
    $region67: #{tpu_custom_call.1} parent=1 // pred_check_branch
      %3326 = sbr.rel (0) target = $region69
    $region68: #{tpu_custom_call.1} parent=1 // pred_region
      %3327 = dma.done [#allocation4], 256
    $region69: #{tpu_custom_call.1} parent=1 // pred_fallthru
      _
    %3328 = vsyncpa [#allocation3], 1
    %3329 = vsyncpa [#allocation6], 1
    %3330 = vsyncpa [#allocation9], 1
    %3331 = vsyncpa [#allocation12], 1
    %3332 = vsyncpa [#allocation4], 1

</llo_original>
